<compile_context>
chip_gen: v5e
topology: v5e:2x2
jax: 0.10.0
libtpu: 0.0.40
codegen_flags: <defaults>
</compile_context>

<pallas_src>
import functools

import jax
import jax.numpy as jnp
from jax import lax
from jax.experimental import pallas as pl
from jax.experimental.pallas import tpu as pltpu

K1_PAD = 32    # conv1 im2col features 25 -> 32
K2_PAD = 256   # conv2 im2col features 250 -> 256
H_PAD = 128    # fc1 hidden 50 -> 128 (zero-padded, lane dense)


# ---------------------------------------------------------------------------
# Kernel A: conv (im2col matmul) + bias + 2x2 max-pool + ReLU, fused.
# ---------------------------------------------------------------------------
def conv_pool_relu_kernel(p_ref, w_ref, b_ref, o_ref, *, m4):
    p = p_ref[0, :, :]                                       # (4*m4, Kpad) bf16
    c = jnp.dot(p, w_ref[...], preferred_element_type=jnp.float32)
    # pooling partners are 4 contiguous row chunks -> elementwise max
    m = jnp.maximum(jnp.maximum(c[0 * m4:1 * m4, :], c[1 * m4:2 * m4, :]),
                    jnp.maximum(c[2 * m4:3 * m4, :], c[3 * m4:4 * m4, :]))
    o_ref[0, :, :] = jnp.maximum(m + b_ref[...], 0.0).astype(o_ref.dtype)


def conv_pool_relu(patches, w, b, m4, o_ch):
    """patches: (N, 4*m4, Kpad) bf16 -> pooled/relu'd conv output (N, m4, o_ch) bf16."""
    N, rows, kpad = patches.shape
    kernel = functools.partial(conv_pool_relu_kernel, m4=m4)
    return pl.pallas_call(
        kernel,
        out_shape=jax.ShapeDtypeStruct((N, m4, o_ch), jnp.bfloat16),
        grid=(N,),
        in_specs=[
            pl.BlockSpec((1, rows, kpad), lambda n: (n, 0, 0)),
            pl.BlockSpec(w.shape, lambda n: (0, 0)),
            pl.BlockSpec((1, o_ch), lambda n: (0, 0)),
        ],
        out_specs=pl.BlockSpec((1, m4, o_ch), lambda n: (n, 0, 0)),
        compiler_params=pltpu.CompilerParams(
            dimension_semantics=("parallel",)),
    )(patches, w, b.reshape(1, o_ch))


# ---------------------------------------------------------------------------
# Kernel B: conv2 block + whole FC head, fused (one grid step per batch elem).
# ---------------------------------------------------------------------------
def conv2_head_kernel(p_ref, w2_ref, b2_ref, s_ref, f1w_ref, f1b_ref,
                      f2w_ref, f2b_ref, o_ref, *, m4, chunk_c):
    # conv2 matmul + bias + 2x2 max-pool + relu
    p = p_ref[0, :, :]                                       # (4*m4, 256) bf16
    c = jnp.dot(p, w2_ref[...], preferred_element_type=jnp.float32)
    pooled = jnp.maximum(jnp.maximum(c[0 * m4:1 * m4, :], c[1 * m4:2 * m4, :]),
                         jnp.maximum(c[2 * m4:3 * m4, :], c[3 * m4:4 * m4, :]))
    pooled = jnp.maximum(pooled + b2_ref[...], 0.0)          # (m4, C2) f32
    # TODO(synk): nn.Dropout2d / F.dropout are identity (inference semantics).

    # Flatten-free fc1: F[s,k] = pooled[s, k % C2] via a 0/1 scatter matmul,
    # keep only block-diagonal entries (k // C2 == s); then
    # sum_s (F_masked @ W1perm) == flat @ W1perm (flatten folded into W1perm).
    f = jnp.dot(pooled.astype(jnp.bfloat16), s_ref[...],
                preferred_element_type=jnp.float32)          # (m4, m4*C2)
    rows = lax.broadcasted_iota(jnp.int32, f.shape, 0)
    cols = lax.broadcasted_iota(jnp.int32, f.shape, 1)
    keep = (cols >= rows * chunk_c) & (cols < (rows + 1) * chunk_c)
    f = jnp.where(keep, f, 0.0)

    g = jnp.dot(f.astype(jnp.bfloat16), f1w_ref[...],
                preferred_element_type=jnp.float32)          # (m4, Hpad)
    h = jnp.sum(g, axis=0, keepdims=True) + f1b_ref[...]     # (1, Hpad)
    h = jnp.maximum(h, 0.0)

    z = jnp.dot(h.astype(jnp.bfloat16), f2w_ref[...],
                preferred_element_type=jnp.float32) + f2b_ref[...]   # (1, 10)
    zmax = jnp.max(z, axis=-1, keepdims=True)
    lse = jnp.log(jnp.sum(jnp.exp(z - zmax), axis=-1, keepdims=True)) + zmax
    o_ref[0, :, :] = (z - lse).astype(o_ref.dtype)


def conv2_head(patches2, w2, b2, scat, f1w, f1b, f2w, f2b):
    N, rows, kpad = patches2.shape
    m4 = rows // 4
    c2 = w2.shape[1]
    hp = f1w.shape[1]
    out_c = f2w.shape[1]
    kernel = functools.partial(conv2_head_kernel, m4=m4, chunk_c=c2)
    out = pl.pallas_call(
        kernel,
        out_shape=jax.ShapeDtypeStruct((N, 1, out_c), jnp.float32),
        grid=(N,),
        in_specs=[
            pl.BlockSpec((1, rows, kpad), lambda n: (n, 0, 0)),
            pl.BlockSpec(w2.shape, lambda n: (0, 0)),
            pl.BlockSpec((1, c2), lambda n: (0, 0)),
            pl.BlockSpec(scat.shape, lambda n: (0, 0)),
            pl.BlockSpec(f1w.shape, lambda n: (0, 0)),
            pl.BlockSpec((1, hp), lambda n: (0, 0)),
            pl.BlockSpec(f2w.shape, lambda n: (0, 0)),
            pl.BlockSpec((1, out_c), lambda n: (0, 0)),
        ],
        out_specs=pl.BlockSpec((1, 1, out_c), lambda n: (n, 0, 0)),
        compiler_params=pltpu.CompilerParams(
            dimension_semantics=("parallel",)),
    )(patches2, w2, b2.reshape(1, c2), scat, f1w, f1b, f2w, f2b)
    return out.reshape(N, out_c)


# ---------------------------------------------------------------------------
# Plain-JAX glue (pure layout work; fused by XLA around the pallas_calls)
# ---------------------------------------------------------------------------
def im2col_pool_major(x_nhwc, k, k_pad):
    """Valid k x k conv patches, rows ordered (pool_ph, pool_pw, a, b) so the
    4 pool partners of pooled output (a, b) are 4 contiguous row chunks.
    Features ordered (ki, kj, c), zero-padded to k_pad, cast to bf16."""
    N, H, W, C = x_nhwc.shape
    oh, ow = H - k + 1, W - k + 1
    oh2, ow2 = oh // 2, ow // 2
    parts = [x_nhwc[:, i:i + oh, j:j + ow, :]
             for i in range(k) for j in range(k)]
    p = jnp.stack(parts, axis=3)                      # (N, oh, ow, k*k, C)
    p = p.reshape(N, oh2, 2, ow2, 2, k * k * C)       # split pool phases
    p = jnp.transpose(p, (0, 2, 4, 1, 3, 5))          # (N, ph, pw, a, b, K)
    p = p.reshape(N, 4 * oh2 * ow2, k * k * C)
    pad = k_pad - k * k * C
    if pad:
        p = jnp.pad(p, ((0, 0), (0, 0), (0, pad)))
    return p.astype(jnp.bfloat16), (oh2, ow2)


def conv_weight_to_mat(w_ochw, k_pad):
    """PyTorch (O, C, KH, KW) conv weight -> padded bf16 matmul weight (k_pad, O)."""
    O, C, KH, KW = w_ochw.shape
    w = jnp.transpose(w_ochw, (2, 3, 1, 0)).reshape(KH * KW * C, O)
    w = jnp.pad(w, ((0, k_pad - KH * KW * C), (0, 0)))
    return w.astype(jnp.bfloat16)


def make_scatter(c, s):
    """S[ci, k] = 1 where k % c == ci, shape (c, s*c); 0/1 so bf16 is exact."""
    k = jnp.arange(s * c)
    return (k[None, :] % c == jnp.arange(c)[:, None]).astype(jnp.bfloat16)


def prep_fc1(w1_pt, b1_pt, c2, spatial, h_pad):
    """Permute fc1 rows so our (a, b, c)-ordered in-kernel flatten matches
    PyTorch's NCHW x.view(-1, 320); pad hidden 50 -> h_pad."""
    w = w1_pt.T                                       # (320, 50), rows = f_pt
    k = jnp.arange(c2 * spatial)
    s, ci = k // c2, k % c2
    w = w[ci * spatial + s, :]                        # rows in our flat order
    h = w1_pt.shape[0]
    w = jnp.pad(w, ((0, 0), (0, h_pad - h))).astype(jnp.bfloat16)
    b = jnp.pad(b1_pt, (0, h_pad - h)).reshape(1, h_pad).astype(jnp.float32)
    return w, b


def prep_fc2(w2_pt, b2_pt, h_pad):
    h, o = w2_pt.shape[1], w2_pt.shape[0]
    w = jnp.pad(w2_pt.T, ((0, h_pad - h), (0, 0))).astype(jnp.bfloat16)
    return w, b2_pt.reshape(1, o).astype(jnp.float32)


def net_forward(x_nchw, params):
    x = jnp.transpose(x_nchw, (0, 2, 3, 1))                  # NCHW -> NHWC
    N = x.shape[0]

    # conv1 (1 -> 10, k=5) + maxpool2 + relu  (fused kernel A)
    p1, (oh2, ow2) = im2col_pool_major(x, 5, K1_PAD)         # (N, 4*144, 32)
    y1 = conv_pool_relu(p1, params["c1w"], params["c1b"], oh2 * ow2, 10)
    y1 = y1.reshape(N, oh2, ow2, 10)                         # (N, 12, 12, 10) bf16

    # conv2 (10 -> 20, k=5) + dropout2d(id) + maxpool2 + relu + fc head
    p2, _ = im2col_pool_major(y1, 5, K2_PAD)                 # (N, 4*16, 256)
    return conv2_head(p2, params["c2w"], params["c2b"], params["scat"],
                      params["f1w"], params["f1b"],
                      params["f2w"], params["f2b"])


# ---------------------------------------------------------------------------
# Pure-JAX f32 reference (for correctness check only)
# ---------------------------------------------------------------------------
def net_reference(x, raw):
    def pool2(y):
        n, c, hh, ww = y.shape
        return y.reshape(n, c, hh // 2, 2, ww // 2, 2).max(axis=(3, 5))

    y = lax.conv_general_dilated(x, raw["conv1_w"], (1, 1), "VALID",
                                 dimension_numbers=("NCHW", "OIHW", "NCHW"))
    y = jnp.maximum(pool2(y + raw["conv1_b"][None, :, None, None]), 0.0)
    y = lax.conv_general_dilated(y, raw["conv2_w"], (1, 1), "VALID",
                                 dimension_numbers=("NCHW", "OIHW", "NCHW"))
    y = jnp.maximum(pool2(y + raw["conv2_b"][None, :, None, None]), 0.0)
    y = y.reshape(y.shape[0], -1)                            # NCHW flatten (320)
    y = jnp.maximum(y @ raw["fc1_w"].T + raw["fc1_b"], 0.0)
    z = y @ raw["fc2_w"].T + raw["fc2_b"]
    return jax.nn.log_softmax(z, axis=-1)


# ---------------------------------------------------------------------------
# Main
# ---------------------------------------------------------------------------
if __name__ == "__main__":
    key = jax.random.PRNGKey(0)
    ks = jax.random.split(key, 9)

    # deterministic synthetic parameters (shapes from Net.__init__)
    raw = {
        "conv1_w": 0.1 * jax.random.normal(ks[1], (10, 1, 5, 5), jnp.float32),
        "conv1_b": 0.1 * jax.random.normal(ks[2], (10,), jnp.float32),
        "conv2_w": 0.1 * jax.random.normal(ks[3], (20, 10, 5, 5), jnp.float32),
        "conv2_b": 0.1 * jax.random.normal(ks[4], (20,), jnp.float32),
        "fc1_w": 0.1 * jax.random.normal(ks[5], (50, 320), jnp.float32),
        "fc1_b": 0.1 * jax.random.normal(ks[6], (50,), jnp.float32),
        "fc2_w": 0.1 * jax.random.normal(ks[7], (10, 50), jnp.float32),
        "fc2_b": 0.1 * jax.random.normal(ks[8], (10,), jnp.float32),
    }

    f1w, f1b = prep_fc1(raw["fc1_w"], raw["fc1_b"], c2=20, spatial=16, h_pad=H_PAD)
    f2w, f2b = prep_fc2(raw["fc2_w"], raw["fc2_b"], h_pad=H_PAD)
    params = {
        "c1w": conv_weight_to_mat(raw["conv1_w"], K1_PAD), "c1b": raw["conv1_b"],
        "c2w": conv_weight_to_mat(raw["conv2_w"], K2_PAD), "c2b": raw["conv2_b"],
        "scat": make_scatter(20, 16),
        "f1w": f1w, "f1b": f1b, "f2w": f2w, "f2b": f2b,
    }

    # input: batch=2, 1x28x28 (28x28 is required for the 320-feature flatten)
    x = jax.random.normal(ks[0], (2, 1, 28, 28), jnp.float32)

    fwd = jax.jit(net_forward)
    out = jax.block_until_ready(fwd(x, params))

    assert out.shape == (2, 10)
    # log_softmax rows must exponentiate-and-sum to 1
    assert jnp.allclose(jnp.sum(jnp.exp(out), axis=-1), 1.0, atol=1e-4)
    # match the pure-JAX f32 reference (loose tol: bf16 MXU inputs)
    ref = jax.block_until_ready(net_reference(x, raw))
    assert jnp.allclose(out, ref, atol=0.25), float(jnp.max(jnp.abs(out - ref)))
    print("KERNEL_OK")
</pallas_src>

<mosaic_0001>
module attributes {stable_mosaic.version = 11 : i64} {
  func.func @conv_pool_relu_kernel(%arg0: i32, %arg1: memref<1x576x32xbf16, #tpu.memory_space<vmem>>, %arg2: memref<32x10xbf16, #tpu.memory_space<vmem>>, %arg3: memref<1x10xf32, #tpu.memory_space<vmem>>, %arg4: memref<1x144x10xbf16, #tpu.memory_space<vmem>>) attributes {dimension_semantics = [#tpu.dimension_semantics<parallel>], iteration_bounds = array<i64: 2>, scalar_prefetch = 0 : i64, scratch_operands = 0 : i64, tpu.core_type = #tpu.core_type<tc>, window_params = [{transform_indices = @transform_0, window_bounds = array<i64: 1, 576, 32>}, {pipeline_mode = #tpu.pipeline_mode<synchronous>, transform_indices = @transform_1, window_bounds = array<i64: 32, 10>}, {pipeline_mode = #tpu.pipeline_mode<synchronous>, transform_indices = @transform_2, window_bounds = array<i64: 1, 10>}, {transform_indices = @transform_3, window_bounds = array<i64: 1, 144, 10>}]} {
    %c0 = arith.constant 0 : index
    %c0_0 = arith.constant 0 : index
    %c0_1 = arith.constant 0 : index
    %0 = vector.load %arg1[%c0, %c0_0, %c0_1] : memref<1x576x32xbf16, #tpu.memory_space<vmem>>, vector<1x576x32xbf16>
    %1 = vector.shape_cast %0 : vector<1x576x32xbf16> to vector<576x32xbf16>
    %c0_2 = arith.constant 0 : index
    %c0_3 = arith.constant 0 : index
    %2 = vector.load %arg2[%c0_2, %c0_3] : memref<32x10xbf16, #tpu.memory_space<vmem>>, vector<32x10xbf16>
    %cst = arith.constant dense<0.000000e+00> : vector<576x10xf32>
    %3 = tpu.matmul %1, %2, %cst {dimension_numbers = #tpu.dot_dimension_numbers<[1], [0], [0], [1], [0, 0, 1, 1], [], []>} : vector<576x32xbf16>, vector<32x10xbf16>, vector<576x10xf32> -> vector<576x10xf32>
    %4 = vector.extract_strided_slice %3 {offsets = [0, 0], sizes = [144, 10], strides = [1, 1]} : vector<576x10xf32> to vector<144x10xf32>
    %5 = vector.extract_strided_slice %3 {offsets = [144, 0], sizes = [144, 10], strides = [1, 1]} : vector<576x10xf32> to vector<144x10xf32>
    %6 = arith.maximumf %4, %5 : vector<144x10xf32>
    %7 = vector.extract_strided_slice %3 {offsets = [288, 0], sizes = [144, 10], strides = [1, 1]} : vector<576x10xf32> to vector<144x10xf32>
    %8 = vector.extract_strided_slice %3 {offsets = [432, 0], sizes = [144, 10], strides = [1, 1]} : vector<576x10xf32> to vector<144x10xf32>
    %9 = arith.maximumf %7, %8 : vector<144x10xf32>
    %10 = arith.maximumf %6, %9 : vector<144x10xf32>
    %c0_4 = arith.constant 0 : index
    %c0_5 = arith.constant 0 : index
    %11 = vector.load %arg3[%c0_4, %c0_5] : memref<1x10xf32, #tpu.memory_space<vmem>>, vector<1x10xf32>
    %12 = vector.broadcast %11 : vector<1x10xf32> to vector<144x10xf32>
    %13 = arith.addf %10, %12 : vector<144x10xf32>
    %cst_6 = arith.constant 0.000000e+00 : f32
    %14 = vector.broadcast %cst_6 : f32 to vector<144x10xf32>
    %15 = arith.maximumf %13, %14 : vector<144x10xf32>
    %16 = arith.truncf %15 : vector<144x10xf32> to vector<144x10xbf16>
    %c0_7 = arith.constant 0 : index
    %c0_8 = arith.constant 0 : index
    %c0_9 = arith.constant 0 : index
    %17 = vector.load %arg4[%c0_7, %c0_8, %c0_9] : memref<1x144x10xbf16, #tpu.memory_space<vmem>>, vector<1x144x10xbf16>
    %18 = vector.shape_cast %17 : vector<1x144x10xbf16> to vector<144x10xbf16>
    %19 = vector.shape_cast %16 : vector<144x10xbf16> to vector<1x144x10xbf16>
    tpu.vector_store %arg4[%c0_7, %c0_8, %c0_9], %19 {strides = array<i32>} : memref<1x144x10xbf16, #tpu.memory_space<vmem>>, vector<1x144x10xbf16>,
    return
  }
  func.func @transform_0(%arg0: i32) -> (i32, i32, i32) {
    %c0_i32 = arith.constant 0 : i32
    %c0_i32_0 = arith.constant 0 : i32
    %c0_i32_1 = arith.constant 0 : i32
    return %arg0, %c0_i32, %c0_i32_0 : i32, i32, i32
  }
  func.func @transform_1(%arg0: i32) -> (i32, i32) {
    %c0_i32 = arith.constant 0 : i32
    %c0_i32_0 = arith.constant 0 : i32
    %c0_i32_1 = arith.constant 0 : i32
    return %c0_i32, %c0_i32_0 : i32, i32
  }
  func.func @transform_2(%arg0: i32) -> (i32, i32) {
    %c0_i32 = arith.constant 0 : i32
    %c0_i32_0 = arith.constant 0 : i32
    %c0_i32_1 = arith.constant 0 : i32
    return %c0_i32, %c0_i32_0 : i32, i32
  }
  func.func @transform_3(%arg0: i32) -> (i32, i32, i32) {
    %c0_i32 = arith.constant 0 : i32
    %c0_i32_0 = arith.constant 0 : i32
    %c0_i32_1 = arith.constant 0 : i32
    return %arg0, %c0_i32, %c0_i32_0 : i32, i32, i32
  }
}

module attributes {stable_mosaic.version = 11 : i64} {
  func.func @conv2_head_kernel(%arg0: i32, %arg1: memref<1x64x256xbf16, #tpu.memory_space<vmem>>, %arg2: memref<256x20xbf16, #tpu.memory_space<vmem>>, %arg3: memref<1x20xf32, #tpu.memory_space<vmem>>, %arg4: memref<20x320xbf16, #tpu.memory_space<vmem>>, %arg5: memref<320x128xbf16, #tpu.memory_space<vmem>>, %arg6: memref<1x128xf32, #tpu.memory_space<vmem>>, %arg7: memref<128x10xbf16, #tpu.memory_space<vmem>>, %arg8: memref<1x10xf32, #tpu.memory_space<vmem>>, %arg9: memref<1x1x10xf32, #tpu.memory_space<vmem>>) attributes {dimension_semantics = [#tpu.dimension_semantics<parallel>], iteration_bounds = array<i64: 2>, scalar_prefetch = 0 : i64, scratch_operands = 0 : i64, tpu.core_type = #tpu.core_type<tc>, window_params = [{transform_indices = @transform_0, window_bounds = array<i64: 1, 64, 256>}, {pipeline_mode = #tpu.pipeline_mode<synchronous>, transform_indices = @transform_1, window_bounds = array<i64: 256, 20>}, {pipeline_mode = #tpu.pipeline_mode<synchronous>, transform_indices = @transform_2, window_bounds = array<i64: 1, 20>}, {pipeline_mode = #tpu.pipeline_mode<synchronous>, transform_indices = @transform_3, window_bounds = array<i64: 20, 320>}, {pipeline_mode = #tpu.pipeline_mode<synchronous>, transform_indices = @transform_4, window_bounds = array<i64: 320, 128>}, {pipeline_mode = #tpu.pipeline_mode<synchronous>, transform_indices = @transform_5, window_bounds = array<i64: 1, 128>}, {pipeline_mode = #tpu.pipeline_mode<synchronous>, transform_indices = @transform_6, window_bounds = array<i64: 128, 10>}, {pipeline_mode = #tpu.pipeline_mode<synchronous>, transform_indices = @transform_7, window_bounds = array<i64: 1, 10>}, {transform_indices = @transform_8, window_bounds = array<i64: 1, 1, 10>}]} {
    %c0 = arith.constant 0 : index
    %c0_0 = arith.constant 0 : index
    %c0_1 = arith.constant 0 : index
    %0 = vector.load %arg1[%c0, %c0_0, %c0_1] : memref<1x64x256xbf16, #tpu.memory_space<vmem>>, vector<1x64x256xbf16>
    %1 = vector.shape_cast %0 : vector<1x64x256xbf16> to vector<64x256xbf16>
    %c0_2 = arith.constant 0 : index
    %c0_3 = arith.constant 0 : index
    %2 = vector.load %arg2[%c0_2, %c0_3] : memref<256x20xbf16, #tpu.memory_space<vmem>>, vector<256x20xbf16>
    %cst = arith.constant dense<0.000000e+00> : vector<64x20xf32>
    %3 = tpu.matmul %1, %2, %cst {dimension_numbers = #tpu.dot_dimension_numbers<[1], [0], [0], [1], [0, 0, 1, 1], [], []>} : vector<64x256xbf16>, vector<256x20xbf16>, vector<64x20xf32> -> vector<64x20xf32>
    %4 = vector.extract_strided_slice %3 {offsets = [0, 0], sizes = [16, 20], strides = [1, 1]} : vector<64x20xf32> to vector<16x20xf32>
    %5 = vector.extract_strided_slice %3 {offsets = [16, 0], sizes = [16, 20], strides = [1, 1]} : vector<64x20xf32> to vector<16x20xf32>
    %6 = arith.maximumf %4, %5 : vector<16x20xf32>
    %7 = vector.extract_strided_slice %3 {offsets = [32, 0], sizes = [16, 20], strides = [1, 1]} : vector<64x20xf32> to vector<16x20xf32>
    %8 = vector.extract_strided_slice %3 {offsets = [48, 0], sizes = [16, 20], strides = [1, 1]} : vector<64x20xf32> to vector<16x20xf32>
    %9 = arith.maximumf %7, %8 : vector<16x20xf32>
    %10 = arith.maximumf %6, %9 : vector<16x20xf32>
    %c0_4 = arith.constant 0 : index
    %c0_5 = arith.constant 0 : index
    %11 = vector.load %arg3[%c0_4, %c0_5] : memref<1x20xf32, #tpu.memory_space<vmem>>, vector<1x20xf32>
    %12 = vector.broadcast %11 : vector<1x20xf32> to vector<16x20xf32>
    %13 = arith.addf %10, %12 : vector<16x20xf32>
    %cst_6 = arith.constant 0.000000e+00 : f32
    %14 = vector.broadcast %cst_6 : f32 to vector<16x20xf32>
    %15 = arith.maximumf %13, %14 : vector<16x20xf32>
    %16 = arith.truncf %15 : vector<16x20xf32> to vector<16x20xbf16>
    %c0_7 = arith.constant 0 : index
    %c0_8 = arith.constant 0 : index
    %17 = vector.load %arg4[%c0_7, %c0_8] : memref<20x320xbf16, #tpu.memory_space<vmem>>, vector<20x320xbf16>
    %cst_9 = arith.constant dense<0.000000e+00> : vector<16x320xf32>
    %18 = tpu.matmul %16, %17, %cst_9 {dimension_numbers = #tpu.dot_dimension_numbers<[1], [0], [0], [1], [0, 0, 1, 1], [], []>} : vector<16x20xbf16>, vector<20x320xbf16>, vector<16x320xf32> -> vector<16x320xf32>
    %19 = tpu.iota {dimensions = array<i32: 0>} : vector<16x320xi32>
    %20 = tpu.iota {dimensions = array<i32: 1>} : vector<16x320xi32>
    %c20_i32 = arith.constant 20 : i32
    %21 = vector.broadcast %c20_i32 : i32 to vector<16x320xi32>
    %22 = arith.muli %19, %21 : vector<16x320xi32>
    %23 = arith.cmpi sge, %20, %22 : vector<16x320xi32>
    %c1_i32 = arith.constant 1 : i32
    %24 = vector.broadcast %c1_i32 : i32 to vector<16x320xi32>
    %25 = arith.addi %19, %24 : vector<16x320xi32>
    %c20_i32_10 = arith.constant 20 : i32
    %26 = vector.broadcast %c20_i32_10 : i32 to vector<16x320xi32>
    %27 = arith.muli %25, %26 : vector<16x320xi32>
    %28 = arith.cmpi slt, %20, %27 : vector<16x320xi32>
    %29 = arith.andi %23, %28 : vector<16x320xi1>
    %cst_11 = arith.constant 0.000000e+00 : f32
    %30 = vector.broadcast %cst_11 : f32 to vector<16x320xf32>
    %31 = arith.select %29, %18, %30 : vector<16x320xi1>, vector<16x320xf32>
    %32 = arith.truncf %31 : vector<16x320xf32> to vector<16x320xbf16>
    %c0_12 = arith.constant 0 : index
    %c0_13 = arith.constant 0 : index
    %33 = vector.load %arg5[%c0_12, %c0_13] : memref<320x128xbf16, #tpu.memory_space<vmem>>, vector<320x128xbf16>
    %cst_14 = arith.constant dense<0.000000e+00> : vector<16x128xf32>
    %34 = tpu.matmul %32, %33, %cst_14 {dimension_numbers = #tpu.dot_dimension_numbers<[1], [0], [0], [1], [0, 0, 1, 1], [], []>} : vector<16x320xbf16>, vector<320x128xbf16>, vector<16x128xf32> -> vector<16x128xf32>
    %cst_15 = arith.constant dense<0.000000e+00> : vector<128xf32>
    %35 = vector.multi_reduction <add>, %34, %cst_15 [0] : vector<16x128xf32> to vector<128xf32>
    %36 = vector.shape_cast %35 : vector<128xf32> to vector<1x128xf32>
    %c0_16 = arith.constant 0 : index
    %c0_17 = arith.constant 0 : index
    %37 = vector.load %arg6[%c0_16, %c0_17] : memref<1x128xf32, #tpu.memory_space<vmem>>, vector<1x128xf32>
    %38 = arith.addf %36, %37 : vector<1x128xf32>
    %cst_18 = arith.constant 0.000000e+00 : f32
    %39 = vector.broadcast %cst_18 : f32 to vector<1x128xf32>
    %40 = arith.maximumf %38, %39 : vector<1x128xf32>
    %41 = arith.truncf %40 : vector<1x128xf32> to vector<1x128xbf16>
    %c0_19 = arith.constant 0 : index
    %c0_20 = arith.constant 0 : index
    %42 = vector.load %arg7[%c0_19, %c0_20] : memref<128x10xbf16, #tpu.memory_space<vmem>>, vector<128x10xbf16>
    %cst_21 = arith.constant dense<0.000000e+00> : vector<1x10xf32>
    %43 = tpu.matmul %41, %42, %cst_21 {dimension_numbers = #tpu.dot_dimension_numbers<[1], [0], [0], [1], [0, 0, 1, 1], [], []>} : vector<1x128xbf16>, vector<128x10xbf16>, vector<1x10xf32> -> vector<1x10xf32>
    %c0_22 = arith.constant 0 : index
    %c0_23 = arith.constant 0 : index
    %44 = vector.load %arg8[%c0_22, %c0_23] : memref<1x10xf32, #tpu.memory_space<vmem>>, vector<1x10xf32>
    %45 = arith.addf %43, %44 : vector<1x10xf32>
    %cst_24 = arith.constant dense<0xFF800000> : vector<1xf32>
    %46 = vector.multi_reduction <maximumf>, %45, %cst_24 [1] : vector<1x10xf32> to vector<1xf32>
    %47 = vector.shape_cast %46 : vector<1xf32> to vector<1x1xf32>
    %48 = vector.broadcast %47 : vector<1x1xf32> to vector<1x10xf32>
    %49 = arith.subf %45, %48 : vector<1x10xf32>
    %50 = math.exp %49 : vector<1x10xf32>
    %cst_25 = arith.constant dense<0.000000e+00> : vector<1xf32>
    %51 = vector.multi_reduction <add>, %50, %cst_25 [1] : vector<1x10xf32> to vector<1xf32>
    %52 = vector.shape_cast %51 : vector<1xf32> to vector<1x1xf32>
    %53 = math.log %52 : vector<1x1xf32>
    %54 = arith.addf %53, %47 : vector<1x1xf32>
    %55 = vector.broadcast %54 : vector<1x1xf32> to vector<1x10xf32>
    %56 = arith.subf %45, %55 : vector<1x10xf32>
    %c0_26 = arith.constant 0 : index
    %c0_27 = arith.constant 0 : index
    %c0_28 = arith.constant 0 : index
    %57 = vector.load %arg9[%c0_26, %c0_27, %c0_28] : memref<1x1x10xf32, #tpu.memory_space<vmem>>, vector<1x1x10xf32>
    %58 = vector.shape_cast %57 : vector<1x1x10xf32> to vector<1x10xf32>
    %59 = vector.shape_cast %56 : vector<1x10xf32> to vector<1x1x10xf32>
    tpu.vector_store %arg9[%c0_26, %c0_27, %c0_28], %59 {strides = array<i32>} : memref<1x1x10xf32, #tpu.memory_space<vmem>>, vector<1x1x10xf32>,
    return
  }
  func.func @transform_0(%arg0: i32) -> (i32, i32, i32) {
    %c0_i32 = arith.constant 0 : i32
    %c0_i32_0 = arith.constant 0 : i32
    %c0_i32_1 = arith.constant 0 : i32
    return %arg0, %c0_i32, %c0_i32_0 : i32, i32, i32
  }
  func.func @transform_1(%arg0: i32) -> (i32, i32) {
    %c0_i32 = arith.constant 0 : i32
    %c0_i32_0 = arith.constant 0 : i32
    %c0_i32_1 = arith.constant 0 : i32
    return %c0_i32, %c0_i32_0 : i32, i32
  }
  func.func @transform_2(%arg0: i32) -> (i32, i32) {
    %c0_i32 = arith.constant 0 : i32
    %c0_i32_0 = arith.constant 0 : i32
    %c0_i32_1 = arith.constant 0 : i32
    return %c0_i32, %c0_i32_0 : i32, i32
  }
  func.func @transform_3(%arg0: i32) -> (i32, i32) {
    %c0_i32 = arith.constant 0 : i32
    %c0_i32_0 = arith.constant 0 : i32
    %c0_i32_1 = arith.constant 0 : i32
    return %c0_i32, %c0_i32_0 : i32, i32
  }
  func.func @transform_4(%arg0: i32) -> (i32, i32) {
    %c0_i32 = arith.constant 0 : i32
    %c0_i32_0 = arith.constant 0 : i32
    %c0_i32_1 = arith.constant 0 : i32
    return %c0_i32, %c0_i32_0 : i32, i32
  }
  func.func @transform_5(%arg0: i32) -> (i32, i32) {
    %c0_i32 = arith.constant 0 : i32
    %c0_i32_0 = arith.constant 0 : i32
    %c0_i32_1 = arith.constant 0 : i32
    return %c0_i32, %c0_i32_0 : i32, i32
  }
  func.func @transform_6(%arg0: i32) -> (i32, i32) {
    %c0_i32 = arith.constant 0 : i32
    %c0_i32_0 = arith.constant 0 : i32
    %c0_i32_1 = arith.constant 0 : i32
    return %c0_i32, %c0_i32_0 : i32, i32
  }
  func.func @transform_7(%arg0: i32) -> (i32, i32) {
    %c0_i32 = arith.constant 0 : i32
    %c0_i32_0 = arith.constant 0 : i32
    %c0_i32_1 = arith.constant 0 : i32
    return %c0_i32, %c0_i32_0 : i32, i32
  }
  func.func @transform_8(%arg0: i32) -> (i32, i32, i32) {
    %c0_i32 = arith.constant 0 : i32
    %c0_i32_0 = arith.constant 0 : i32
    %c0_i32_1 = arith.constant 0 : i32
    return %arg0, %c0_i32, %c0_i32_0 : i32, i32, i32
  }
}

</mosaic_0001>

<llo_original>
// kernel: net_forward.2
$region0: #{net_forward.2}
  #allocation0 [shape = 'u32[]', space=smem, size = 0x4, offset = 0x4, fixed_abs, tag = 'smem constant byte address 0x4 - core index']
  #allocation1 [shape = 'u32[72,128]{1,0:T(1,128)}', space=vmem, size = 0x9000, scoped, tag = 'internal scratch']
  %s0 = inlined_call_operand.vmem [shape: bf16[2,576,32], index: 0, kind: input, shape index: {}]
  %s1 = inlined_call_operand.vmem [shape: bf16[32,10], index: 1, kind: input, shape index: {}]
  %s2 = inlined_call_operand.vmem [shape: f32[1,10], index: 2, kind: input, shape index: {}]
  %s3 = inlined_call_operand.vmem [shape: bf16[2,144,10], index: 3, kind: output, shape index: {}]
  %s4 = sld [smem:[#allocation0]]
  $region45: #{net_forward.2} parent=0
    _
  %s6 = ssub.s32 1, %s4
  %s7 = scalar_select 0, %s6, %s4
  loop: start=0, step=1, limit=4
  $region2: #{net_forward.2} parent=0 // loop_pre_header
    _
  $region3: #{net_forward.2} parent=0 // loop_header
    %s9 = sphi 0, %s13
    %p10 = scmp.ge.s32.totalorder %s9, 4
    %s19 = sphi 0, %s21
    %s22 = sphi 0, %s19
    %s23 = sphi 0, %s22
    %s39 = sphi 0, %s23
    %s43 = sphi 0, %s43
    %s45 = sphi 0, %s43
    %s46 = sphi 0, %s45
    %s60 = sphi 0, %s46
    %s64 = sphi 0, %s64
    %s66 = sphi 0, %s64
    %s67 = sphi 0, %s66
    %s81 = sphi 0, %s67
    %s87 = sphi 0, %s89
    %s90 = sphi 0, %s87
    %s91 = sphi 0, %s90
    %s107 = sphi 0, %s91
  $region4: #{net_forward.2} parent=0 // loop_header_branch
    %12 = sbr.rel (%p10) target = $region8
  $region5: #{net_forward.2} parent=0 // loop_body
    %s14 = ssub.s32 %s9, 1
    %s15 = ssub.s32 %s9, 2
    %s16 = sadd.s32 %s9, 1
    %s17 = ssub.s32 %s9, %s16
    %p18 = scmp.eq.s32.totalorder %s17, 0
    %s20 = sadd.s32 %s19, 1
    %s21 = scalar_select %p18, %s19, %s20
    %p24 = pneg %p18
    %p25 = scmp.eq.s32.totalorder %s9, 1
    %p26 = por %p24, %p25
    %p27 = scmp.ne.s32.totalorder %s19, %s22
    %p28 = scmp.eq.s32.totalorder %s9, 0
    %p29 = por %p27, %p28
    %p30 = scmp.ne.s32.totalorder %s19, %s22
    %p31 = scmp.eq.s32.totalorder %s14, 1
    %p32 = por %p30, %p31
    %p33 = scmp.ne.s32.totalorder %s22, %s23
    %p34 = scmp.eq.s32.totalorder %s14, 0
    %p35 = por %p33, %p34
    %p36 = scmp.ne.s32.totalorder %s22, %s23
    %p37 = scmp.eq.s32.totalorder %s15, 1
    %p38 = por %p36, %p37
    %p40 = scmp.ne.s32.totalorder %s23, %s39
    %p41 = scmp.eq.s32.totalorder %s15, 0
    %p42 = por %p40, %p41
    %s44 = sadd.s32 %s43, 1
    %p47 = scmp.eq.s32.totalorder %s9, 1
    %p48 = scmp.ne.s32.totalorder %s43, %s45
    %p49 = scmp.eq.s32.totalorder %s9, 0
    %p50 = por %p48, %p49
    %p51 = scmp.ne.s32.totalorder %s43, %s45
    %p52 = scmp.eq.s32.totalorder %s14, 1
    %p53 = por %p51, %p52
    %p54 = scmp.ne.s32.totalorder %s45, %s46
    %p55 = scmp.eq.s32.totalorder %s14, 0
    %p56 = por %p54, %p55
    %p57 = scmp.ne.s32.totalorder %s45, %s46
    %p58 = scmp.eq.s32.totalorder %s15, 1
    %p59 = por %p57, %p58
    %p61 = scmp.ne.s32.totalorder %s46, %s60
    %p62 = scmp.eq.s32.totalorder %s15, 0
    %p63 = por %p61, %p62
    %s65 = sadd.s32 %s64, 1
    %p68 = scmp.eq.s32.totalorder %s9, 1
    %p69 = scmp.ne.s32.totalorder %s64, %s66
    %p70 = scmp.eq.s32.totalorder %s9, 0
    %p71 = por %p69, %p70
    %p72 = scmp.ne.s32.totalorder %s64, %s66
    %p73 = scmp.eq.s32.totalorder %s14, 1
    %p74 = por %p72, %p73
    %p75 = scmp.ne.s32.totalorder %s66, %s67
    %p76 = scmp.eq.s32.totalorder %s14, 0
    %p77 = por %p75, %p76
    %p78 = scmp.ne.s32.totalorder %s66, %s67
    %p79 = scmp.eq.s32.totalorder %s15, 1
    %p80 = por %p78, %p79
    %p82 = scmp.ne.s32.totalorder %s67, %s81
    %p83 = scmp.eq.s32.totalorder %s15, 0
    %p84 = por %p82, %p83
    %s85 = ssub.s32 %s9, %s16
    %p86 = scmp.eq.s32.totalorder %s85, 0
    %s88 = sadd.s32 %s87, 1
    %s89 = scalar_select %p86, %s87, %s88
    %p92 = pneg %p86
    %p93 = scmp.eq.s32.totalorder %s9, 1
    %p94 = por %p92, %p93
    %p95 = scmp.ne.s32.totalorder %s87, %s90
    %p96 = scmp.eq.s32.totalorder %s9, 0
    %p97 = por %p95, %p96
    %p98 = scmp.ne.s32.totalorder %s87, %s90
    %p99 = scmp.eq.s32.totalorder %s14, 1
    %p100 = por %p98, %p99
    %p101 = scmp.ne.s32.totalorder %s90, %s91
    %p102 = scmp.eq.s32.totalorder %s14, 0
    %p103 = por %p101, %p102
    %p104 = scmp.ne.s32.totalorder %s90, %s91
    %p105 = scmp.eq.s32.totalorder %s15, 1
    %p106 = por %p104, %p105
    %p108 = scmp.ne.s32.totalorder %s91, %s107
    %p109 = scmp.eq.s32.totalorder %s15, 0
    %p110 = por %p108, %p109
    %p111 = scmp.le.s32.totalorder 1, %s9
    %p112 = scmp.lt.s32.totalorder %s9, 3
    %p113 = pnand %p111, %p112
    %p114 = pneg %p113
    // Predicated region
    $region9: #{net_forward.2} parent=5 // pred_check
      _
    $region10: #{net_forward.2} parent=5 // pred_check_branch
      %116 = sbr.rel (%p113) target = $region12
    $region11: #{net_forward.2} parent=5 // pred_region
      %s117 = ssub.s32 %s9, 1
      // Predicated region
      $region13: #{net_forward.2} parent=11 // pred_check
        %p118 = pneg %p56
      $region14: #{net_forward.2} parent=11 // pred_check_branch
        %120 = sbr.rel (%p118) target = $region16
      $region15: #{net_forward.2} parent=11 // pred_region
        _
      $region16: #{net_forward.2} parent=11 // pred_fallthru
        _
      // Predicated region
      $region17: #{net_forward.2} parent=11 // pred_check
        %p121 = pneg %p77
      $region18: #{net_forward.2} parent=11 // pred_check_branch
        %123 = sbr.rel (%p121) target = $region20
      $region19: #{net_forward.2} parent=11 // pred_region
        _
      $region20: #{net_forward.2} parent=11 // pred_fallthru
        _
    $region12: #{net_forward.2} parent=5 // pred_fallthru
      _
    %p124 = scmp.lt.s32.totalorder %s9, 2
    // Predicated region
    $region21: #{net_forward.2} parent=5 // pred_check
      %p125 = pneg %p124
    $region22: #{net_forward.2} parent=5 // pred_check_branch
      %127 = sbr.rel (%p125) target = $region24
    $region23: #{net_forward.2} parent=5 // pred_region
      // Predicated region
      $region25: #{net_forward.2} parent=23 // pred_check
        %p128 = pneg %p29
      $region26: #{net_forward.2} parent=23 // pred_check_branch
        %130 = sbr.rel (%p128) target = $region28
      $region27: #{net_forward.2} parent=23 // pred_region
        %p131 = scmp.lt.s32.totalorder %s9, 1
        %s132 = scalar_select %p131, %s9, 1
        %s133 = smul.addr %s132, 72
        %s134 = smul.addr %s133, 4
        %s135 = scalar_lea.vmem %s0, %s134
      $region28: #{net_forward.2} parent=23 // pred_fallthru
        _
    $region24: #{net_forward.2} parent=5 // pred_fallthru
      _
    %p136 = scmp.le.s32.totalorder 1, %s9
    %p137 = scmp.lt.s32.totalorder %s9, 3
    %p138 = pnand %p136, %p137
    %p139 = pneg %p138
    // Predicated region
    $region29: #{net_forward.2} parent=5 // pred_check
      _
    $region30: #{net_forward.2} parent=5 // pred_check_branch
      %141 = sbr.rel (%p138) target = $region32
    $region31: #{net_forward.2} parent=5 // pred_region
      %s142 = ssub.s32 %s9, 1
      %p143 = scmp.lt.s32.totalorder %s14, 1
      %s144 = scalar_select %p143, %s14, 1
      %s145 = smul.addr %s144, 72
      %s146 = smul.addr %s145, 4
      %s147 = scalar_lea.vmem %s0, %s146
      %p148 = pneg %p35
      %p149 = pneg %p32
      %p150 = pneg %p56
      %p151 = pneg %p53
      %p152 = pneg %p77
      %p153 = pneg %p74
      %p154 = pneg %p103
      %p155 = pneg %p100
      %p156 = scmp.lt.s32.totalorder %s14, 1
      %s157 = scalar_select %p156, %s14, 1
      %s158 = smul.addr %s157, 18
      %s159 = smul.addr %s158, 4
      %s160 = scalar_lea.vmem %s3, %s159
      %p161 = scmp.lt.s32.totalorder %s14, 1
      %s162 = scalar_select %p161, %s14, 1
      %s163 = smul.addr %s162, 72
      %s164 = smul.addr %s163, 4
      %s165 = scalar_lea.vmem %s0, %s164
      %p166 = scmp.lt.s32.totalorder %s14, 1
      %s167 = scalar_select %p166, %s14, 1
      %s168 = smul.addr %s167, 18
      %s169 = smul.addr %s168, 4
      %s170 = scalar_lea.vmem %s3, %s169
      %v172 = vld [vmem:[%s165] sm:$0xf]
      %v173 = vld [vmem:[%s165 + $0x4] sm:$0xf]
      %v174 = vld [vmem:[%s165 + $0x8] sm:$0xf]
      %v175 = vld [vmem:[%s165 + $0xc] sm:$0xf]
      %v176 = vld [vmem:[%s165 + $0x10] sm:$0xf]
      %v177 = vld [vmem:[%s165 + $0x14] sm:$0xf]
      %v178 = vld [vmem:[%s165 + $0x18] sm:$0xf]
      %v179 = vld [vmem:[%s165 + $0x1c] sm:$0xf]
      %v180 = vld [vmem:[%s165 + $0x20] sm:$0xf]
      %v181 = vld [vmem:[%s165 + $0x24] sm:$0xf]
      %v182 = vld [vmem:[%s165 + $0x28] sm:$0xf]
      %v183 = vld [vmem:[%s165 + $0x2c] sm:$0xf]
      %v184 = vld [vmem:[%s165 + $0x30] sm:$0xf]
      %v185 = vld [vmem:[%s165 + $0x34] sm:$0xf]
      %v186 = vld [vmem:[%s165 + $0x38] sm:$0xf]
      %v187 = vld [vmem:[%s165 + $0x3c] sm:$0xf]
      %v188 = vld [vmem:[%s165 + $0x40] sm:$0xf]
      %v189 = vld [vmem:[%s165 + $0x44] sm:$0xf]
      %v190 = vld [vmem:[%s165 + $0x48] sm:$0xf]
      %v191 = vld [vmem:[%s165 + $0x4c] sm:$0xf]
      %v192 = vld [vmem:[%s165 + $0x50] sm:$0xf]
      %v193 = vld [vmem:[%s165 + $0x54] sm:$0xf]
      %v194 = vld [vmem:[%s165 + $0x58] sm:$0xf]
      %v195 = vld [vmem:[%s165 + $0x5c] sm:$0xf]
      %v196 = vld [vmem:[%s165 + $0x60] sm:$0xf]
      %v197 = vld [vmem:[%s165 + $0x64] sm:$0xf]
      %v198 = vld [vmem:[%s165 + $0x68] sm:$0xf]
      %v199 = vld [vmem:[%s165 + $0x6c] sm:$0xf]
      %v200 = vld [vmem:[%s165 + $0x70] sm:$0xf]
      %v201 = vld [vmem:[%s165 + $0x74] sm:$0xf]
      %v202 = vld [vmem:[%s165 + $0x78] sm:$0xf]
      %v203 = vld [vmem:[%s165 + $0x7c] sm:$0xf]
      %v204 = vld [vmem:[%s165 + $0x80] sm:$0xf]
      %v205 = vld [vmem:[%s165 + $0x84] sm:$0xf]
      %v206 = vld [vmem:[%s165 + $0x88] sm:$0xf]
      %v207 = vld [vmem:[%s165 + $0x8c] sm:$0xf]
      %v208 = vld [vmem:[%s165 + $0x90] sm:$0xf]
      %v209 = vld [vmem:[%s165 + $0x94] sm:$0xf]
      %v210 = vld [vmem:[%s165 + $0x98] sm:$0xf]
      %v211 = vld [vmem:[%s165 + $0x9c] sm:$0xf]
      %v212 = vld [vmem:[%s165 + $0xa0] sm:$0xf]
      %v213 = vld [vmem:[%s165 + $0xa4] sm:$0xf]
      %v214 = vld [vmem:[%s165 + $0xa8] sm:$0xf]
      %v215 = vld [vmem:[%s165 + $0xac] sm:$0xf]
      %v216 = vld [vmem:[%s165 + $0xb0] sm:$0xf]
      %v217 = vld [vmem:[%s165 + $0xb4] sm:$0xf]
      %v218 = vld [vmem:[%s165 + $0xb8] sm:$0xf]
      %v219 = vld [vmem:[%s165 + $0xbc] sm:$0xf]
      %v220 = vld [vmem:[%s165 + $0xc0] sm:$0xf]
      %v221 = vld [vmem:[%s165 + $0xc4] sm:$0xf]
      %v222 = vld [vmem:[%s165 + $0xc8] sm:$0xf]
      %v223 = vld [vmem:[%s165 + $0xcc] sm:$0xf]
      %v224 = vld [vmem:[%s165 + $0xd0] sm:$0xf]
      %v225 = vld [vmem:[%s165 + $0xd4] sm:$0xf]
      %v226 = vld [vmem:[%s165 + $0xd8] sm:$0xf]
      %v227 = vld [vmem:[%s165 + $0xdc] sm:$0xf]
      %v228 = vld [vmem:[%s165 + $0xe0] sm:$0xf]
      %v229 = vld [vmem:[%s165 + $0xe4] sm:$0xf]
      %v230 = vld [vmem:[%s165 + $0xe8] sm:$0xf]
      %v231 = vld [vmem:[%s165 + $0xec] sm:$0xf]
      %v232 = vld [vmem:[%s165 + $0xf0] sm:$0xf]
      %v233 = vld [vmem:[%s165 + $0xf4] sm:$0xf]
      %v234 = vld [vmem:[%s165 + $0xf8] sm:$0xf]
      %v235 = vld [vmem:[%s165 + $0xfc] sm:$0xf]
      %v236 = vld [vmem:[%s165 + $0x100] sm:$0xf]
      %v237 = vld [vmem:[%s165 + $0x104] sm:$0xf]
      %v238 = vld [vmem:[%s165 + $0x108] sm:$0xf]
      %v239 = vld [vmem:[%s165 + $0x10c] sm:$0xf]
      %v240 = vld [vmem:[%s165 + $0x110] sm:$0xf]
      %v241 = vld [vmem:[%s165 + $0x114] sm:$0xf]
      %v242 = vld [vmem:[%s165 + $0x118] sm:$0xf]
      %v243 = vld [vmem:[%s165 + $0x11c] sm:$0xf]
      %v244 = vld [vmem:[%s1] sm:$0xf]
      %v245 = vld [vmem:[%s1 + $0x4] sm:$0xf]
      %v246 = vld [vmem:[%s1 + $0x8] sm:$0xf]
      %v247 = vld [vmem:[%s1 + $0xc] sm:$0xf]
      %v320 = vunpack.c.l.b16 %v172
      %v321 = vunpack.c.l.b16 %v173
      %v322 = vunpack.c.l.b16 %v174
      %v323 = vunpack.c.l.b16 %v175
      %v324 = vunpack.c.l.b16 %v176
      %v325 = vunpack.c.l.b16 %v177
      %v326 = vunpack.c.l.b16 %v178
      %v327 = vunpack.c.l.b16 %v179
      %v328 = vunpack.c.l.b16 %v180
      %v329 = vunpack.c.l.b16 %v181
      %v330 = vunpack.c.l.b16 %v182
      %v331 = vunpack.c.l.b16 %v183
      %v332 = vunpack.c.l.b16 %v184
      %v333 = vunpack.c.l.b16 %v185
      %v334 = vunpack.c.l.b16 %v186
      %v335 = vunpack.c.l.b16 %v187
      %v336 = vunpack.c.l.b16 %v188
      %v337 = vunpack.c.l.b16 %v189
      %v338 = vunpack.c.l.b16 %v190
      %v339 = vunpack.c.l.b16 %v191
      %v340 = vunpack.c.l.b16 %v192
      %v341 = vunpack.c.l.b16 %v193
      %v342 = vunpack.c.l.b16 %v194
      %v343 = vunpack.c.l.b16 %v195
      %v344 = vunpack.c.l.b16 %v196
      %v345 = vunpack.c.l.b16 %v197
      %v346 = vunpack.c.l.b16 %v198
      %v347 = vunpack.c.l.b16 %v199
      %v348 = vunpack.c.l.b16 %v200
      %v349 = vunpack.c.l.b16 %v201
      %v350 = vunpack.c.l.b16 %v202
      %v351 = vunpack.c.l.b16 %v203
      %v352 = vunpack.c.l.b16 %v204
      %v353 = vunpack.c.l.b16 %v205
      %v354 = vunpack.c.l.b16 %v206
      %v355 = vunpack.c.l.b16 %v207
      %v356 = vunpack.c.l.b16 %v208
      %v357 = vunpack.c.l.b16 %v209
      %v358 = vunpack.c.l.b16 %v210
      %v359 = vunpack.c.l.b16 %v211
      %v360 = vunpack.c.l.b16 %v212
      %v361 = vunpack.c.l.b16 %v213
      %v362 = vunpack.c.l.b16 %v214
      %v363 = vunpack.c.l.b16 %v215
      %v364 = vunpack.c.l.b16 %v216
      %v365 = vunpack.c.l.b16 %v217
      %v366 = vunpack.c.l.b16 %v218
      %v367 = vunpack.c.l.b16 %v219
      %v368 = vunpack.c.l.b16 %v220
      %v369 = vunpack.c.l.b16 %v221
      %v370 = vunpack.c.l.b16 %v222
      %v371 = vunpack.c.l.b16 %v223
      %v372 = vunpack.c.l.b16 %v224
      %v373 = vunpack.c.l.b16 %v225
      %v374 = vunpack.c.l.b16 %v226
      %v375 = vunpack.c.l.b16 %v227
      %v376 = vunpack.c.l.b16 %v228
      %v377 = vunpack.c.l.b16 %v229
      %v378 = vunpack.c.l.b16 %v230
      %v379 = vunpack.c.l.b16 %v231
      %v380 = vunpack.c.l.b16 %v232
      %v381 = vunpack.c.l.b16 %v233
      %v382 = vunpack.c.l.b16 %v234
      %v383 = vunpack.c.l.b16 %v235
      %v384 = vunpack.c.l.b16 %v236
      %v385 = vunpack.c.l.b16 %v237
      %v386 = vunpack.c.l.b16 %v238
      %v387 = vunpack.c.l.b16 %v239
      %v388 = vunpack.c.l.b16 %v240
      %v389 = vunpack.c.l.b16 %v241
      %v390 = vunpack.c.l.b16 %v242
      %v391 = vunpack.c.l.b16 %v243
      %v392 = vpack.c.b16 %v321, %v320
      %v393 = vpack.c.b16 %v323, %v322
      %v394 = vpack.c.b16 %v325, %v324
      %v395 = vpack.c.b16 %v327, %v326
      %v396 = vpack.c.b16 %v329, %v328
      %v397 = vpack.c.b16 %v331, %v330
      %v398 = vpack.c.b16 %v333, %v332
      %v399 = vpack.c.b16 %v335, %v334
      %v400 = vpack.c.b16 %v337, %v336
      %v401 = vpack.c.b16 %v339, %v338
      %v402 = vpack.c.b16 %v341, %v340
      %v403 = vpack.c.b16 %v343, %v342
      %v404 = vpack.c.b16 %v345, %v344
      %v405 = vpack.c.b16 %v347, %v346
      %v406 = vpack.c.b16 %v349, %v348
      %v407 = vpack.c.b16 %v351, %v350
      %v408 = vpack.c.b16 %v353, %v352
      %v409 = vpack.c.b16 %v355, %v354
      %v410 = vpack.c.b16 %v357, %v356
      %v411 = vpack.c.b16 %v359, %v358
      %v412 = vpack.c.b16 %v361, %v360
      %v413 = vpack.c.b16 %v363, %v362
      %v414 = vpack.c.b16 %v365, %v364
      %v415 = vpack.c.b16 %v367, %v366
      %v416 = vpack.c.b16 %v369, %v368
      %v417 = vpack.c.b16 %v371, %v370
      %v418 = vpack.c.b16 %v373, %v372
      %v419 = vpack.c.b16 %v375, %v374
      %v420 = vpack.c.b16 %v377, %v376
      %v421 = vpack.c.b16 %v379, %v378
      %v422 = vpack.c.b16 %v381, %v380
      %v423 = vpack.c.b16 %v383, %v382
      %v424 = vpack.c.b16 %v385, %v384
      %v425 = vpack.c.b16 %v387, %v386
      %v426 = vpack.c.b16 %v389, %v388
      %v427 = vpack.c.b16 %v391, %v390
      %v432 = vunpack.c.l.b16 %v244
      %v433 = vunpack.c.l.b16 %v245
      %v434 = vunpack.c.l.b16 %v246
      %v435 = vunpack.c.l.b16 %v247
      %v436 = vpack.c.b16 %v433, %v432
      %v437 = vpack.c.b16 %v435, %v434
      %vm440 = vcmask 261120
      %v442 = vsel %vm440, %v392, 0
      %v445 = vsel %vm440, %v393, 0
      %v448 = vsel %vm440, %v394, 0
      %v451 = vsel %vm440, %v395, 0
      %v454 = vsel %vm440, %v396, 0
      %v457 = vsel %vm440, %v397, 0
      %v460 = vsel %vm440, %v398, 0
      %v463 = vsel %vm440, %v399, 0
      %v466 = vsel %vm440, %v400, 0
      %v469 = vsel %vm440, %v401, 0
      %v472 = vsel %vm440, %v402, 0
      %v475 = vsel %vm440, %v403, 0
      %v478 = vsel %vm440, %v404, 0
      %v481 = vsel %vm440, %v405, 0
      %v484 = vsel %vm440, %v406, 0
      %v487 = vsel %vm440, %v407, 0
      %v490 = vsel %vm440, %v408, 0
      %v493 = vsel %vm440, %v409, 0
      %v496 = vsel %vm440, %v410, 0
      %v499 = vsel %vm440, %v411, 0
      %v502 = vsel %vm440, %v412, 0
      %v505 = vsel %vm440, %v413, 0
      %v508 = vsel %vm440, %v414, 0
      %v511 = vsel %vm440, %v415, 0
      %v514 = vsel %vm440, %v416, 0
      %v517 = vsel %vm440, %v417, 0
      %v520 = vsel %vm440, %v418, 0
      %v523 = vsel %vm440, %v419, 0
      %v526 = vsel %vm440, %v420, 0
      %v529 = vsel %vm440, %v421, 0
      %v532 = vsel %vm440, %v422, 0
      %v535 = vsel %vm440, %v423, 0
      %v538 = vsel %vm440, %v424, 0
      %v541 = vsel %vm440, %v425, 0
      %v544 = vsel %vm440, %v426, 0
      %v547 = vsel %vm440, %v427, 0
      %549 = vmatpush.bf16.msra.mxu0 0
      %550 = vmatpush.bf16.msra.mxu0 0
      %551 = vmatpush.bf16.msra.mxu0 0
      %552 = vmatpush.bf16.msra.mxu0 0
      %553 = vmatpush.bf16.msra.mxu0 0
      %554 = vmatpush.bf16.msra.mxu0 0
      %555 = vmatpush.bf16.msra.mxu0 %v437
      %556 = vmatpush.bf16.msra.mxu0 %v436
      %557 = vmatmul.bf16.gmra.mxu0 %v442
      %v558 = vpop.f32.mrf.mxu0
      %v559 = vadd.f32 0.0, %v558
      %v560 = vpop.f32.mrf.mxu0
      %v561 = vadd.f32 0.0, %v560
      %562 = vmatmul.bf16.gmra.mxu0 %v445
      %v563 = vpop.f32.mrf.mxu0
      %v564 = vadd.f32 0.0, %v563
      %v565 = vpop.f32.mrf.mxu0
      %v566 = vadd.f32 0.0, %v565
      %567 = vmatmul.bf16.gmra.mxu0 %v448
      %v568 = vpop.f32.mrf.mxu0
      %v569 = vadd.f32 0.0, %v568
      %v570 = vpop.f32.mrf.mxu0
      %v571 = vadd.f32 0.0, %v570
      %572 = vmatmul.bf16.gmra.mxu0 %v451
      %v573 = vpop.f32.mrf.mxu0
      %v574 = vadd.f32 0.0, %v573
      %v575 = vpop.f32.mrf.mxu0
      %v576 = vadd.f32 0.0, %v575
      %577 = vmatmul.bf16.gmra.mxu0 %v454
      %v578 = vpop.f32.mrf.mxu0
      %v579 = vadd.f32 0.0, %v578
      %v580 = vpop.f32.mrf.mxu0
      %v581 = vadd.f32 0.0, %v580
      %582 = vmatmul.bf16.gmra.mxu0 %v457
      %v583 = vpop.f32.mrf.mxu0
      %v584 = vadd.f32 0.0, %v583
      %v585 = vpop.f32.mrf.mxu0
      %v586 = vadd.f32 0.0, %v585
      %587 = vmatmul.bf16.gmra.mxu0 %v460
      %v588 = vpop.f32.mrf.mxu0
      %v589 = vadd.f32 0.0, %v588
      %v590 = vpop.f32.mrf.mxu0
      %v591 = vadd.f32 0.0, %v590
      %592 = vmatmul.bf16.gmra.mxu0 %v463
      %v593 = vpop.f32.mrf.mxu0
      %v594 = vadd.f32 0.0, %v593
      %v595 = vpop.f32.mrf.mxu0
      %v596 = vadd.f32 0.0, %v595
      %597 = vmatmul.bf16.gmra.mxu0 %v466
      %v598 = vpop.f32.mrf.mxu0
      %v599 = vadd.f32 0.0, %v598
      %v600 = vpop.f32.mrf.mxu0
      %v601 = vadd.f32 0.0, %v600
      %602 = vmatmul.bf16.gmra.mxu0 %v469
      %v603 = vpop.f32.mrf.mxu0
      %v604 = vadd.f32 0.0, %v603
      %v605 = vpop.f32.mrf.mxu0
      %v606 = vadd.f32 0.0, %v605
      %607 = vmatmul.bf16.gmra.mxu0 %v472
      %v608 = vpop.f32.mrf.mxu0
      %v609 = vadd.f32 0.0, %v608
      %v610 = vpop.f32.mrf.mxu0
      %v611 = vadd.f32 0.0, %v610
      %612 = vmatmul.bf16.gmra.mxu0 %v475
      %v613 = vpop.f32.mrf.mxu0
      %v614 = vadd.f32 0.0, %v613
      %v615 = vpop.f32.mrf.mxu0
      %v616 = vadd.f32 0.0, %v615
      %617 = vmatmul.bf16.gmra.mxu0 %v478
      %v618 = vpop.f32.mrf.mxu0
      %v619 = vadd.f32 0.0, %v618
      %v620 = vpop.f32.mrf.mxu0
      %v621 = vadd.f32 0.0, %v620
      %622 = vmatmul.bf16.gmra.mxu0 %v481
      %v623 = vpop.f32.mrf.mxu0
      %v624 = vadd.f32 0.0, %v623
      %v625 = vpop.f32.mrf.mxu0
      %v626 = vadd.f32 0.0, %v625
      %627 = vmatmul.bf16.gmra.mxu0 %v484
      %v628 = vpop.f32.mrf.mxu0
      %v629 = vadd.f32 0.0, %v628
      %v630 = vpop.f32.mrf.mxu0
      %v631 = vadd.f32 0.0, %v630
      %632 = vmatmul.bf16.gmra.mxu0 %v487
      %v633 = vpop.f32.mrf.mxu0
      %v634 = vadd.f32 0.0, %v633
      %v635 = vpop.f32.mrf.mxu0
      %v636 = vadd.f32 0.0, %v635
      %637 = vmatmul.bf16.gmra.mxu0 %v490
      %v638 = vpop.f32.mrf.mxu0
      %v639 = vadd.f32 0.0, %v638
      %v640 = vpop.f32.mrf.mxu0
      %v641 = vadd.f32 0.0, %v640
      %642 = vmatmul.bf16.gmra.mxu0 %v493
      %v643 = vpop.f32.mrf.mxu0
      %v644 = vadd.f32 0.0, %v643
      %v645 = vpop.f32.mrf.mxu0
      %v646 = vadd.f32 0.0, %v645
      %647 = vmatmul.bf16.gmra.mxu0 %v496
      %v648 = vpop.f32.mrf.mxu0
      %v649 = vadd.f32 0.0, %v648
      %v650 = vpop.f32.mrf.mxu0
      %v651 = vadd.f32 0.0, %v650
      %652 = vmatmul.bf16.gmra.mxu0 %v499
      %v653 = vpop.f32.mrf.mxu0
      %v654 = vadd.f32 0.0, %v653
      %v655 = vpop.f32.mrf.mxu0
      %v656 = vadd.f32 0.0, %v655
      %657 = vmatmul.bf16.gmra.mxu0 %v502
      %v658 = vpop.f32.mrf.mxu0
      %v659 = vadd.f32 0.0, %v658
      %v660 = vpop.f32.mrf.mxu0
      %v661 = vadd.f32 0.0, %v660
      %662 = vmatmul.bf16.gmra.mxu0 %v505
      %v663 = vpop.f32.mrf.mxu0
      %v664 = vadd.f32 0.0, %v663
      %v665 = vpop.f32.mrf.mxu0
      %v666 = vadd.f32 0.0, %v665
      %667 = vmatmul.bf16.gmra.mxu0 %v508
      %v668 = vpop.f32.mrf.mxu0
      %v669 = vadd.f32 0.0, %v668
      %v670 = vpop.f32.mrf.mxu0
      %v671 = vadd.f32 0.0, %v670
      %672 = vmatmul.bf16.gmra.mxu0 %v511
      %v673 = vpop.f32.mrf.mxu0
      %v674 = vadd.f32 0.0, %v673
      %v675 = vpop.f32.mrf.mxu0
      %v676 = vadd.f32 0.0, %v675
      %677 = vmatmul.bf16.gmra.mxu0 %v514
      %v678 = vpop.f32.mrf.mxu0
      %v679 = vadd.f32 0.0, %v678
      %v680 = vpop.f32.mrf.mxu0
      %v681 = vadd.f32 0.0, %v680
      %682 = vmatmul.bf16.gmra.mxu0 %v517
      %v683 = vpop.f32.mrf.mxu0
      %v684 = vadd.f32 0.0, %v683
      %v685 = vpop.f32.mrf.mxu0
      %v686 = vadd.f32 0.0, %v685
      %687 = vmatmul.bf16.gmra.mxu0 %v520
      %v688 = vpop.f32.mrf.mxu0
      %v689 = vadd.f32 0.0, %v688
      %v690 = vpop.f32.mrf.mxu0
      %v691 = vadd.f32 0.0, %v690
      %692 = vmatmul.bf16.gmra.mxu0 %v523
      %v693 = vpop.f32.mrf.mxu0
      %v694 = vadd.f32 0.0, %v693
      %v695 = vpop.f32.mrf.mxu0
      %v696 = vadd.f32 0.0, %v695
      %697 = vmatmul.bf16.gmra.mxu0 %v526
      %v698 = vpop.f32.mrf.mxu0
      %v699 = vadd.f32 0.0, %v698
      %v700 = vpop.f32.mrf.mxu0
      %v701 = vadd.f32 0.0, %v700
      %702 = vmatmul.bf16.gmra.mxu0 %v529
      %v703 = vpop.f32.mrf.mxu0
      %v704 = vadd.f32 0.0, %v703
      %v705 = vpop.f32.mrf.mxu0
      %v706 = vadd.f32 0.0, %v705
      %707 = vmatmul.bf16.gmra.mxu0 %v532
      %v708 = vpop.f32.mrf.mxu0
      %v709 = vadd.f32 0.0, %v708
      %v710 = vpop.f32.mrf.mxu0
      %v711 = vadd.f32 0.0, %v710
      %712 = vmatmul.bf16.gmra.mxu0 %v535
      %v713 = vpop.f32.mrf.mxu0
      %v714 = vadd.f32 0.0, %v713
      %v715 = vpop.f32.mrf.mxu0
      %v716 = vadd.f32 0.0, %v715
      %717 = vmatmul.bf16.gmra.mxu0 %v538
      %v718 = vpop.f32.mrf.mxu0
      %v719 = vadd.f32 0.0, %v718
      %v720 = vpop.f32.mrf.mxu0
      %v721 = vadd.f32 0.0, %v720
      %722 = vmatmul.bf16.gmra.mxu0 %v541
      %v723 = vpop.f32.mrf.mxu0
      %v724 = vadd.f32 0.0, %v723
      %v725 = vpop.f32.mrf.mxu0
      %v726 = vadd.f32 0.0, %v725
      %727 = vmatmul.bf16.gmra.mxu0 %v544
      %v728 = vpop.f32.mrf.mxu0
      %v729 = vadd.f32 0.0, %v728
      %v730 = vpop.f32.mrf.mxu0
      %v731 = vadd.f32 0.0, %v730
      %732 = vmatmul.bf16.gmra.mxu0 %v547
      %v733 = vpop.f32.mrf.mxu0
      %v734 = vadd.f32 0.0, %v733
      %v735 = vpop.f32.mrf.mxu0
      %v736 = vadd.f32 0.0, %v735
      %737 = vdwg.mxu0
      %v738 = vmax.f32 %v559, %v604
      %v739 = vmax.f32 %v561, %v606
      %v740 = vmax.f32 %v564, %v609
      %v741 = vmax.f32 %v566, %v611
      %v742 = vmax.f32 %v569, %v614
      %v743 = vmax.f32 %v571, %v616
      %v744 = vmax.f32 %v574, %v619
      %v745 = vmax.f32 %v576, %v621
      %v746 = vmax.f32 %v579, %v624
      %v747 = vmax.f32 %v581, %v626
      %v748 = vmax.f32 %v584, %v629
      %v749 = vmax.f32 %v586, %v631
      %v750 = vmax.f32 %v589, %v634
      %v751 = vmax.f32 %v591, %v636
      %v752 = vmax.f32 %v594, %v639
      %v753 = vmax.f32 %v596, %v641
      %v754 = vmax.f32 %v599, %v644
      %v755 = vmax.f32 %v601, %v646
      %v756 = vmax.f32 %v649, %v694
      %v757 = vmax.f32 %v651, %v696
      %v758 = vmax.f32 %v654, %v699
      %v759 = vmax.f32 %v656, %v701
      %v760 = vmax.f32 %v659, %v704
      %v761 = vmax.f32 %v661, %v706
      %v762 = vmax.f32 %v664, %v709
      %v763 = vmax.f32 %v666, %v711
      %v764 = vmax.f32 %v669, %v714
      %v765 = vmax.f32 %v671, %v716
      %v766 = vmax.f32 %v674, %v719
      %v767 = vmax.f32 %v676, %v721
      %v768 = vmax.f32 %v679, %v724
      %v769 = vmax.f32 %v681, %v726
      %v770 = vmax.f32 %v684, %v729
      %v771 = vmax.f32 %v686, %v731
      %v772 = vmax.f32 %v689, %v734
      %v773 = vmax.f32 %v691, %v736
      %v774 = vmax.f32 %v738, %v756
      %v775 = vmax.f32 %v739, %v757
      %v776 = vmax.f32 %v740, %v758
      %v777 = vmax.f32 %v741, %v759
      %v778 = vmax.f32 %v742, %v760
      %v779 = vmax.f32 %v743, %v761
      %v780 = vmax.f32 %v744, %v762
      %v781 = vmax.f32 %v745, %v763
      %v782 = vmax.f32 %v746, %v764
      %v783 = vmax.f32 %v747, %v765
      %v784 = vmax.f32 %v748, %v766
      %v785 = vmax.f32 %v749, %v767
      %v786 = vmax.f32 %v750, %v768
      %v787 = vmax.f32 %v751, %v769
      %v788 = vmax.f32 %v752, %v770
      %v789 = vmax.f32 %v753, %v771
      %v790 = vmax.f32 %v754, %v772
      %v791 = vmax.f32 %v755, %v773
      %v792 = vld [vmem:[%s2] sm:$0x1]
      %v794 = vperm.slane %v792, 0
      %v796 = vadd.f32 %v774, %v794
      %v797 = vadd.f32 %v775, %v794
      %v798 = vadd.f32 %v776, %v794
      %v799 = vadd.f32 %v777, %v794
      %v800 = vadd.f32 %v778, %v794
      %v801 = vadd.f32 %v779, %v794
      %v802 = vadd.f32 %v780, %v794
      %v803 = vadd.f32 %v781, %v794
      %v804 = vadd.f32 %v782, %v794
      %v805 = vadd.f32 %v783, %v794
      %v806 = vadd.f32 %v784, %v794
      %v807 = vadd.f32 %v785, %v794
      %v808 = vadd.f32 %v786, %v794
      %v809 = vadd.f32 %v787, %v794
      %v810 = vadd.f32 %v788, %v794
      %v811 = vadd.f32 %v789, %v794
      %v812 = vadd.f32 %v790, %v794
      %v813 = vadd.f32 %v791, %v794
      %v814 = vmax.f32 %v796, 0.0
      %v815 = vmax.f32 %v797, 0.0
      %v816 = vmax.f32 %v798, 0.0
      %v817 = vmax.f32 %v799, 0.0
      %v818 = vmax.f32 %v800, 0.0
      %v819 = vmax.f32 %v801, 0.0
      %v820 = vmax.f32 %v802, 0.0
      %v821 = vmax.f32 %v803, 0.0
      %v822 = vmax.f32 %v804, 0.0
      %v823 = vmax.f32 %v805, 0.0
      %v824 = vmax.f32 %v806, 0.0
      %v825 = vmax.f32 %v807, 0.0
      %v826 = vmax.f32 %v808, 0.0
      %v827 = vmax.f32 %v809, 0.0
      %v828 = vmax.f32 %v810, 0.0
      %v829 = vmax.f32 %v811, 0.0
      %v830 = vmax.f32 %v812, 0.0
      %v831 = vmax.f32 %v813, 0.0
      %v832 = vpack.c.bf16 %v814, %v814
      %v833 = vpack.c.bf16 %v815, %v815
      %v834 = vpack.c.bf16 %v816, %v816
      %v835 = vpack.c.bf16 %v817, %v817
      %v836 = vpack.c.bf16 %v818, %v818
      %v837 = vpack.c.bf16 %v819, %v819
      %v838 = vpack.c.bf16 %v820, %v820
      %v839 = vpack.c.bf16 %v821, %v821
      %v840 = vpack.c.bf16 %v822, %v822
      %v841 = vpack.c.bf16 %v823, %v823
      %v842 = vpack.c.bf16 %v824, %v824
      %v843 = vpack.c.bf16 %v825, %v825
      %v844 = vpack.c.bf16 %v826, %v826
      %v845 = vpack.c.bf16 %v827, %v827
      %v846 = vpack.c.bf16 %v828, %v828
      %v847 = vpack.c.bf16 %v829, %v829
      %v848 = vpack.c.bf16 %v830, %v830
      %v849 = vpack.c.bf16 %v831, %v831
      %vm850 = vcmask 76800
      %851 = vst.msk [vmem:[%s170] sm:$0xf] %vm850, %v832
      %852 = vst.msk [vmem:[%s170 + $0x4] sm:$0xf] %vm850, %v833
      %853 = vst.msk [vmem:[%s170 + $0x8] sm:$0xf] %vm850, %v834
      %854 = vst.msk [vmem:[%s170 + $0xc] sm:$0xf] %vm850, %v835
      %855 = vst.msk [vmem:[%s170 + $0x10] sm:$0xf] %vm850, %v836
      %856 = vst.msk [vmem:[%s170 + $0x14] sm:$0xf] %vm850, %v837
      %857 = vst.msk [vmem:[%s170 + $0x18] sm:$0xf] %vm850, %v838
      %858 = vst.msk [vmem:[%s170 + $0x1c] sm:$0xf] %vm850, %v839
      %859 = vst.msk [vmem:[%s170 + $0x20] sm:$0xf] %vm850, %v840
      %860 = vst.msk [vmem:[%s170 + $0x24] sm:$0xf] %vm850, %v841
      %861 = vst.msk [vmem:[%s170 + $0x28] sm:$0xf] %vm850, %v842
      %862 = vst.msk [vmem:[%s170 + $0x2c] sm:$0xf] %vm850, %v843
      %863 = vst.msk [vmem:[%s170 + $0x30] sm:$0xf] %vm850, %v844
      %864 = vst.msk [vmem:[%s170 + $0x34] sm:$0xf] %vm850, %v845
      %865 = vst.msk [vmem:[%s170 + $0x38] sm:$0xf] %vm850, %v846
      %866 = vst.msk [vmem:[%s170 + $0x3c] sm:$0xf] %vm850, %v847
      %867 = vst.msk [vmem:[%s170 + $0x40] sm:$0xf] %vm850, %v848
      %868 = vst.msk [vmem:[%s170 + $0x44] sm:$0xf] %vm850, %v849
      %p869 = scmp.lt.s32.totalorder %s14, 1
      %s870 = scalar_select %p869, %s14, 1
      %s871 = smul.addr %s870, 18
      %s872 = smul.addr %s871, 4
      %s873 = scalar_lea.vmem %s3, %s872
      // Predicated region
      $region33: #{net_forward.2} parent=31 // pred_check
        %p874 = pneg %p100
      $region34: #{net_forward.2} parent=31 // pred_check_branch
        %876 = sbr.rel (%p874) target = $region36
      $region35: #{net_forward.2} parent=31 // pred_region
        _
      $region36: #{net_forward.2} parent=31 // pred_fallthru
        _
    $region32: #{net_forward.2} parent=5 // pred_fallthru
      _
    %p877 = scmp.le.s32.totalorder 2, %s9
    // Predicated region
    $region37: #{net_forward.2} parent=5 // pred_check
      %p878 = pneg %p877
    $region38: #{net_forward.2} parent=5 // pred_check_branch
      %880 = sbr.rel (%p878) target = $region40
    $region39: #{net_forward.2} parent=5 // pred_region
      %s881 = ssub.s32 %s9, 2
      // Predicated region
      $region41: #{net_forward.2} parent=39 // pred_check
        %p882 = pneg %p106
      $region42: #{net_forward.2} parent=39 // pred_check_branch
        %884 = sbr.rel (%p882) target = $region44
      $region43: #{net_forward.2} parent=39 // pred_region
        %p885 = scmp.lt.s32.totalorder %s15, 1
        %s886 = scalar_select %p885, %s15, 1
        %s887 = smul.addr %s886, 18
        %s888 = smul.addr %s887, 4
        %s889 = scalar_lea.vmem %s3, %s888
      $region44: #{net_forward.2} parent=39 // pred_fallthru
        _
    $region40: #{net_forward.2} parent=5 // pred_fallthru
      _
  $region6: #{net_forward.2} parent=0 // loop_footer
    %s13 = sadd.s32 1, %s9
  $region7: #{net_forward.2} parent=0 // loop_footer_branch
    %8 = sbr.rel target = $region3
  $region8: #{net_forward.2} parent=0 // loop_exit
    _

// kernel: net_forward.3
$region0: #{net_forward.3}
  #allocation0 [shape = 'u32[]', space=smem, size = 0x4, offset = 0x4, fixed_abs, tag = 'smem constant byte address 0x4 - core index']
  #allocation1 [shape = 'u32[72,128]{1,0:T(1,128)}', space=vmem, size = 0x9000, scoped, tag = 'internal scratch']
  %s0 = inlined_call_operand.vmem [shape: bf16[2,64,256], index: 0, kind: input, shape index: {}]
  %s1 = inlined_call_operand.vmem [shape: bf16[256,20], index: 1, kind: input, shape index: {}]
  %s2 = inlined_call_operand.vmem [shape: f32[1,20], index: 2, kind: input, shape index: {}]
  %s3 = inlined_call_operand.vmem [shape: bf16[20,320], index: 3, kind: input, shape index: {}]
  %s4 = inlined_call_operand.vmem [shape: bf16[320,128], index: 4, kind: input, shape index: {}]
  %s5 = inlined_call_operand.vmem [shape: f32[1,128], index: 5, kind: input, shape index: {}]
  %s6 = inlined_call_operand.vmem [shape: bf16[128,10], index: 6, kind: input, shape index: {}]
  %s7 = inlined_call_operand.vmem [shape: f32[1,10], index: 7, kind: input, shape index: {}]
  %s8 = inlined_call_operand.hbm [shape: f32[2,1,10], index: 8, kind: output, shape index: {}]
  %s9 = sld [smem:[#allocation0]]
  $region65: #{net_forward.3} parent=0
    _
  %s11 = ssub.s32 1, %s9
  %s12 = scalar_select 0, %s11, %s9
  $region1: #{net_forward.3} parent=0
    #allocation2 [shape = 'u8[1024]{0}', space=vmem, size = 0x400, scoped, tag = 'output window, operand 0']
    #allocation3 [shape = 's32[2]{0}', space=sflag, size = 0x8, scoped, tag = 'scoped memory for net_forward.3']
    %13 = vsyncpa [#allocation3], 0
    %s14 = scalar_lea.sflag [#allocation3], 1
    %15 = vsyncpa %s14, 0
    loop: start=0, step=1, limit=4
    $region2: #{net_forward.3} parent=1 // loop_pre_header
      _
    $region3: #{net_forward.3} parent=1 // loop_header
      %s17 = sphi 0, %s21
      %p18 = scmp.ge.s32.totalorder %s17, 4
      %s27 = sphi 0, %s29
      %s30 = sphi 0, %s27
      %s31 = sphi 0, %s30
      %s47 = sphi 0, %s31
      %s51 = sphi 0, %s51
      %s53 = sphi 0, %s51
      %s54 = sphi 0, %s53
      %s68 = sphi 0, %s54
      %s72 = sphi 0, %s72
      %s74 = sphi 0, %s72
      %s75 = sphi 0, %s74
      %s89 = sphi 0, %s75
      %s93 = sphi 0, %s93
      %s95 = sphi 0, %s93
      %s96 = sphi 0, %s95
      %s110 = sphi 0, %s96
      %s114 = sphi 0, %s114
      %s116 = sphi 0, %s114
      %s117 = sphi 0, %s116
      %s131 = sphi 0, %s117
      %s135 = sphi 0, %s135
      %s137 = sphi 0, %s135
      %s138 = sphi 0, %s137
      %s152 = sphi 0, %s138
      %s156 = sphi 0, %s156
      %s158 = sphi 0, %s156
      %s159 = sphi 0, %s158
      %s173 = sphi 0, %s159
      %s177 = sphi 0, %s177
      %s179 = sphi 0, %s177
      %s180 = sphi 0, %s179
      %s194 = sphi 0, %s180
      %s200 = sphi 0, %s202
      %s203 = sphi 0, %s200
      %s204 = sphi 0, %s203
      %s220 = sphi 0, %s204
    $region4: #{net_forward.3} parent=1 // loop_header_branch
      %20 = sbr.rel (%p18) target = $region8
    $region5: #{net_forward.3} parent=1 // loop_body
      %s22 = ssub.s32 %s17, 1
      %s23 = ssub.s32 %s17, 2
      %s24 = sadd.s32 %s17, 1
      %s25 = ssub.s32 %s17, %s24
      %p26 = scmp.eq.s32.totalorder %s25, 0
      %s28 = sadd.s32 %s27, 1
      %s29 = scalar_select %p26, %s27, %s28
      %p32 = pneg %p26
      %p33 = scmp.eq.s32.totalorder %s17, 1
      %p34 = por %p32, %p33
      %p35 = scmp.ne.s32.totalorder %s27, %s30
      %p36 = scmp.eq.s32.totalorder %s17, 0
      %p37 = por %p35, %p36
      %p38 = scmp.ne.s32.totalorder %s27, %s30
      %p39 = scmp.eq.s32.totalorder %s22, 1
      %p40 = por %p38, %p39
      %p41 = scmp.ne.s32.totalorder %s30, %s31
      %p42 = scmp.eq.s32.totalorder %s22, 0
      %p43 = por %p41, %p42
      %p44 = scmp.ne.s32.totalorder %s30, %s31
      %p45 = scmp.eq.s32.totalorder %s23, 1
      %p46 = por %p44, %p45
      %p48 = scmp.ne.s32.totalorder %s31, %s47
      %p49 = scmp.eq.s32.totalorder %s23, 0
      %p50 = por %p48, %p49
      %s52 = sadd.s32 %s51, 1
      %p55 = scmp.eq.s32.totalorder %s17, 1
      %p56 = scmp.ne.s32.totalorder %s51, %s53
      %p57 = scmp.eq.s32.totalorder %s17, 0
      %p58 = por %p56, %p57
      %p59 = scmp.ne.s32.totalorder %s51, %s53
      %p60 = scmp.eq.s32.totalorder %s22, 1
      %p61 = por %p59, %p60
      %p62 = scmp.ne.s32.totalorder %s53, %s54
      %p63 = scmp.eq.s32.totalorder %s22, 0
      %p64 = por %p62, %p63
      %p65 = scmp.ne.s32.totalorder %s53, %s54
      %p66 = scmp.eq.s32.totalorder %s23, 1
      %p67 = por %p65, %p66
      %p69 = scmp.ne.s32.totalorder %s54, %s68
      %p70 = scmp.eq.s32.totalorder %s23, 0
      %p71 = por %p69, %p70
      %s73 = sadd.s32 %s72, 1
      %p76 = scmp.eq.s32.totalorder %s17, 1
      %p77 = scmp.ne.s32.totalorder %s72, %s74
      %p78 = scmp.eq.s32.totalorder %s17, 0
      %p79 = por %p77, %p78
      %p80 = scmp.ne.s32.totalorder %s72, %s74
      %p81 = scmp.eq.s32.totalorder %s22, 1
      %p82 = por %p80, %p81
      %p83 = scmp.ne.s32.totalorder %s74, %s75
      %p84 = scmp.eq.s32.totalorder %s22, 0
      %p85 = por %p83, %p84
      %p86 = scmp.ne.s32.totalorder %s74, %s75
      %p87 = scmp.eq.s32.totalorder %s23, 1
      %p88 = por %p86, %p87
      %p90 = scmp.ne.s32.totalorder %s75, %s89
      %p91 = scmp.eq.s32.totalorder %s23, 0
      %p92 = por %p90, %p91
      %s94 = sadd.s32 %s93, 1
      %p97 = scmp.eq.s32.totalorder %s17, 1
      %p98 = scmp.ne.s32.totalorder %s93, %s95
      %p99 = scmp.eq.s32.totalorder %s17, 0
      %p100 = por %p98, %p99
      %p101 = scmp.ne.s32.totalorder %s93, %s95
      %p102 = scmp.eq.s32.totalorder %s22, 1
      %p103 = por %p101, %p102
      %p104 = scmp.ne.s32.totalorder %s95, %s96
      %p105 = scmp.eq.s32.totalorder %s22, 0
      %p106 = por %p104, %p105
      %p107 = scmp.ne.s32.totalorder %s95, %s96
      %p108 = scmp.eq.s32.totalorder %s23, 1
      %p109 = por %p107, %p108
      %p111 = scmp.ne.s32.totalorder %s96, %s110
      %p112 = scmp.eq.s32.totalorder %s23, 0
      %p113 = por %p111, %p112
      %s115 = sadd.s32 %s114, 1
      %p118 = scmp.eq.s32.totalorder %s17, 1
      %p119 = scmp.ne.s32.totalorder %s114, %s116
      %p120 = scmp.eq.s32.totalorder %s17, 0
      %p121 = por %p119, %p120
      %p122 = scmp.ne.s32.totalorder %s114, %s116
      %p123 = scmp.eq.s32.totalorder %s22, 1
      %p124 = por %p122, %p123
      %p125 = scmp.ne.s32.totalorder %s116, %s117
      %p126 = scmp.eq.s32.totalorder %s22, 0
      %p127 = por %p125, %p126
      %p128 = scmp.ne.s32.totalorder %s116, %s117
      %p129 = scmp.eq.s32.totalorder %s23, 1
      %p130 = por %p128, %p129
      %p132 = scmp.ne.s32.totalorder %s117, %s131
      %p133 = scmp.eq.s32.totalorder %s23, 0
      %p134 = por %p132, %p133
      %s136 = sadd.s32 %s135, 1
      %p139 = scmp.eq.s32.totalorder %s17, 1
      %p140 = scmp.ne.s32.totalorder %s135, %s137
      %p141 = scmp.eq.s32.totalorder %s17, 0
      %p142 = por %p140, %p141
      %p143 = scmp.ne.s32.totalorder %s135, %s137
      %p144 = scmp.eq.s32.totalorder %s22, 1
      %p145 = por %p143, %p144
      %p146 = scmp.ne.s32.totalorder %s137, %s138
      %p147 = scmp.eq.s32.totalorder %s22, 0
      %p148 = por %p146, %p147
      %p149 = scmp.ne.s32.totalorder %s137, %s138
      %p150 = scmp.eq.s32.totalorder %s23, 1
      %p151 = por %p149, %p150
      %p153 = scmp.ne.s32.totalorder %s138, %s152
      %p154 = scmp.eq.s32.totalorder %s23, 0
      %p155 = por %p153, %p154
      %s157 = sadd.s32 %s156, 1
      %p160 = scmp.eq.s32.totalorder %s17, 1
      %p161 = scmp.ne.s32.totalorder %s156, %s158
      %p162 = scmp.eq.s32.totalorder %s17, 0
      %p163 = por %p161, %p162
      %p164 = scmp.ne.s32.totalorder %s156, %s158
      %p165 = scmp.eq.s32.totalorder %s22, 1
      %p166 = por %p164, %p165
      %p167 = scmp.ne.s32.totalorder %s158, %s159
      %p168 = scmp.eq.s32.totalorder %s22, 0
      %p169 = por %p167, %p168
      %p170 = scmp.ne.s32.totalorder %s158, %s159
      %p171 = scmp.eq.s32.totalorder %s23, 1
      %p172 = por %p170, %p171
      %p174 = scmp.ne.s32.totalorder %s159, %s173
      %p175 = scmp.eq.s32.totalorder %s23, 0
      %p176 = por %p174, %p175
      %s178 = sadd.s32 %s177, 1
      %p181 = scmp.eq.s32.totalorder %s17, 1
      %p182 = scmp.ne.s32.totalorder %s177, %s179
      %p183 = scmp.eq.s32.totalorder %s17, 0
      %p184 = por %p182, %p183
      %p185 = scmp.ne.s32.totalorder %s177, %s179
      %p186 = scmp.eq.s32.totalorder %s22, 1
      %p187 = por %p185, %p186
      %p188 = scmp.ne.s32.totalorder %s179, %s180
      %p189 = scmp.eq.s32.totalorder %s22, 0
      %p190 = por %p188, %p189
      %p191 = scmp.ne.s32.totalorder %s179, %s180
      %p192 = scmp.eq.s32.totalorder %s23, 1
      %p193 = por %p191, %p192
      %p195 = scmp.ne.s32.totalorder %s180, %s194
      %p196 = scmp.eq.s32.totalorder %s23, 0
      %p197 = por %p195, %p196
      %s198 = ssub.s32 %s17, %s24
      %p199 = scmp.eq.s32.totalorder %s198, 0
      %s201 = sadd.s32 %s200, 1
      %s202 = scalar_select %p199, %s200, %s201
      %p205 = pneg %p199
      %p206 = scmp.eq.s32.totalorder %s17, 1
      %p207 = por %p205, %p206
      %p208 = scmp.ne.s32.totalorder %s200, %s203
      %p209 = scmp.eq.s32.totalorder %s17, 0
      %p210 = por %p208, %p209
      %p211 = scmp.ne.s32.totalorder %s200, %s203
      %p212 = scmp.eq.s32.totalorder %s22, 1
      %p213 = por %p211, %p212
      %p214 = scmp.ne.s32.totalorder %s203, %s204
      %p215 = scmp.eq.s32.totalorder %s22, 0
      %p216 = por %p214, %p215
      %p217 = scmp.ne.s32.totalorder %s203, %s204
      %p218 = scmp.eq.s32.totalorder %s23, 1
      %p219 = por %p217, %p218
      %p221 = scmp.ne.s32.totalorder %s204, %s220
      %p222 = scmp.eq.s32.totalorder %s23, 0
      %p223 = por %p221, %p222
      %p224 = scmp.le.s32.totalorder 1, %s17
      %p225 = scmp.lt.s32.totalorder %s17, 3
      %p226 = pnand %p224, %p225
      %p227 = pneg %p226
      // Predicated region
      $region9: #{net_forward.3} parent=5 // pred_check
        _
      $region10: #{net_forward.3} parent=5 // pred_check_branch
        %229 = sbr.rel (%p226) target = $region12
      $region11: #{net_forward.3} parent=5 // pred_region
        %s230 = ssub.s32 %s17, 1
        // Predicated region
        $region13: #{net_forward.3} parent=11 // pred_check
          %p231 = pneg %p64
        $region14: #{net_forward.3} parent=11 // pred_check_branch
          %233 = sbr.rel (%p231) target = $region16
        $region15: #{net_forward.3} parent=11 // pred_region
          _
        $region16: #{net_forward.3} parent=11 // pred_fallthru
          _
        // Predicated region
        $region17: #{net_forward.3} parent=11 // pred_check
          %p234 = pneg %p85
        $region18: #{net_forward.3} parent=11 // pred_check_branch
          %236 = sbr.rel (%p234) target = $region20
        $region19: #{net_forward.3} parent=11 // pred_region
          _
        $region20: #{net_forward.3} parent=11 // pred_fallthru
          _
        // Predicated region
        $region21: #{net_forward.3} parent=11 // pred_check
          %p237 = pneg %p106
        $region22: #{net_forward.3} parent=11 // pred_check_branch
          %239 = sbr.rel (%p237) target = $region24
        $region23: #{net_forward.3} parent=11 // pred_region
          _
        $region24: #{net_forward.3} parent=11 // pred_fallthru
          _
        // Predicated region
        $region25: #{net_forward.3} parent=11 // pred_check
          %p240 = pneg %p127
        $region26: #{net_forward.3} parent=11 // pred_check_branch
          %242 = sbr.rel (%p240) target = $region28
        $region27: #{net_forward.3} parent=11 // pred_region
          _
        $region28: #{net_forward.3} parent=11 // pred_fallthru
          _
        // Predicated region
        $region29: #{net_forward.3} parent=11 // pred_check
          %p243 = pneg %p148
        $region30: #{net_forward.3} parent=11 // pred_check_branch
          %245 = sbr.rel (%p243) target = $region32
        $region31: #{net_forward.3} parent=11 // pred_region
          _
        $region32: #{net_forward.3} parent=11 // pred_fallthru
          _
        // Predicated region
        $region33: #{net_forward.3} parent=11 // pred_check
          %p246 = pneg %p169
        $region34: #{net_forward.3} parent=11 // pred_check_branch
          %248 = sbr.rel (%p246) target = $region36
        $region35: #{net_forward.3} parent=11 // pred_region
          _
        $region36: #{net_forward.3} parent=11 // pred_fallthru
          _
        // Predicated region
        $region37: #{net_forward.3} parent=11 // pred_check
          %p249 = pneg %p190
        $region38: #{net_forward.3} parent=11 // pred_check_branch
          %251 = sbr.rel (%p249) target = $region40
        $region39: #{net_forward.3} parent=11 // pred_region
          _
        $region40: #{net_forward.3} parent=11 // pred_fallthru
          _
      $region12: #{net_forward.3} parent=5 // pred_fallthru
        _
      %p252 = scmp.lt.s32.totalorder %s17, 2
      // Predicated region
      $region41: #{net_forward.3} parent=5 // pred_check
        %p253 = pneg %p252
      $region42: #{net_forward.3} parent=5 // pred_check_branch
        %255 = sbr.rel (%p253) target = $region44
      $region43: #{net_forward.3} parent=5 // pred_region
        // Predicated region
        $region45: #{net_forward.3} parent=43 // pred_check
          %p256 = pneg %p37
        $region46: #{net_forward.3} parent=43 // pred_check_branch
          %258 = sbr.rel (%p256) target = $region48
        $region47: #{net_forward.3} parent=43 // pred_region
          %p259 = scmp.lt.s32.totalorder %s17, 1
          %s260 = scalar_select %p259, %s17, 1
          %s261 = smul.addr %s260, 16
          %s262 = smul.addr %s261, 4
          %s263 = scalar_lea.vmem %s0, %s262
        $region48: #{net_forward.3} parent=43 // pred_fallthru
          _
      $region44: #{net_forward.3} parent=5 // pred_fallthru
        _
      %p264 = scmp.le.s32.totalorder 1, %s17
      %p265 = scmp.lt.s32.totalorder %s17, 3
      %p266 = pnand %p264, %p265
      %p267 = pneg %p266
      // Predicated region
      $region49: #{net_forward.3} parent=5 // pred_check
        _
      $region50: #{net_forward.3} parent=5 // pred_check_branch
        %269 = sbr.rel (%p266) target = $region52
      $region51: #{net_forward.3} parent=5 // pred_region
        %s270 = ssub.s32 %s17, 1
        %p271 = scmp.lt.s32.totalorder %s22, 1
        %s272 = scalar_select %p271, %s22, 1
        %s273 = smul.addr %s272, 16
        %s274 = smul.addr %s273, 4
        %s275 = scalar_lea.vmem %s0, %s274
        %p276 = pneg %p43
        %p277 = pneg %p40
        %p278 = pneg %p64
        %p279 = pneg %p61
        %p280 = pneg %p85
        %p281 = pneg %p82
        %p282 = pneg %p106
        %p283 = pneg %p103
        %p284 = pneg %p127
        %p285 = pneg %p124
        %p286 = pneg %p148
        %p287 = pneg %p145
        %p288 = pneg %p169
        %p289 = pneg %p166
        %p290 = pneg %p190
        %p291 = pneg %p187
        %p292 = pneg %p216
        %p293 = pneg %p213
        %s294 = sand.u32 %s203, 1
        %s295 = scalar_lea.sflag [#allocation3], %s294
        %s296 = sand.u32 %s203, 1
        %s297 = scalar_lea.vmem [#allocation2], %s296
        %p298 = scmp.lt.s32.totalorder %s22, 1
        %s299 = scalar_select %p298, %s22, 1
        %s300 = smul.addr %s299, 16
        %s301 = smul.addr %s300, 4
        %s302 = scalar_lea.vmem %s0, %s301
        %v304 = vld [vmem:[%s302] sm:$0xff]
        %v305 = vld [vmem:[%s302 + $0x8] sm:$0xff]
        %v306 = vld [vmem:[%s302 + $0x10] sm:$0xff]
        %v307 = vld [vmem:[%s302 + $0x18] sm:$0xff]
        %v308 = vld [vmem:[%s302 + $0x20] sm:$0xff]
        %v309 = vld [vmem:[%s302 + $0x28] sm:$0xff]
        %v310 = vld [vmem:[%s302 + $0x30] sm:$0xff]
        %v311 = vld [vmem:[%s302 + $0x38] sm:$0xff]
        %v312 = vld [vmem:[%s1] sm:$0xf]
        %v313 = vld [vmem:[%s1 + $0x4] sm:$0xf]
        %v314 = vld [vmem:[%s1 + $0x8] sm:$0xf]
        %v315 = vld [vmem:[%s1 + $0xc] sm:$0xf]
        %v316 = vld [vmem:[%s1 + $0x10] sm:$0xf]
        %v317 = vld [vmem:[%s1 + $0x14] sm:$0xf]
        %v318 = vld [vmem:[%s1 + $0x18] sm:$0xf]
        %v319 = vld [vmem:[%s1 + $0x1c] sm:$0xf]
        %v320 = vld [vmem:[%s1 + $0x20] sm:$0xf]
        %v321 = vld [vmem:[%s1 + $0x24] sm:$0xf]
        %v322 = vld [vmem:[%s1 + $0x28] sm:$0xf]
        %v323 = vld [vmem:[%s1 + $0x2c] sm:$0xf]
        %v324 = vld [vmem:[%s1 + $0x30] sm:$0xf]
        %v325 = vld [vmem:[%s1 + $0x34] sm:$0xf]
        %v326 = vld [vmem:[%s1 + $0x38] sm:$0xf]
        %v327 = vld [vmem:[%s1 + $0x3c] sm:$0xf]
        %v328 = vld [vmem:[%s1 + $0x40] sm:$0xf]
        %v329 = vld [vmem:[%s1 + $0x44] sm:$0xf]
        %v330 = vld [vmem:[%s1 + $0x48] sm:$0xf]
        %v331 = vld [vmem:[%s1 + $0x4c] sm:$0xf]
        %v332 = vld [vmem:[%s1 + $0x50] sm:$0xf]
        %v333 = vld [vmem:[%s1 + $0x54] sm:$0xf]
        %v334 = vld [vmem:[%s1 + $0x58] sm:$0xf]
        %v335 = vld [vmem:[%s1 + $0x5c] sm:$0xf]
        %v336 = vld [vmem:[%s1 + $0x60] sm:$0xf]
        %v337 = vld [vmem:[%s1 + $0x64] sm:$0xf]
        %v338 = vld [vmem:[%s1 + $0x68] sm:$0xf]
        %v339 = vld [vmem:[%s1 + $0x6c] sm:$0xf]
        %v340 = vld [vmem:[%s1 + $0x70] sm:$0xf]
        %v341 = vld [vmem:[%s1 + $0x74] sm:$0xf]
        %v342 = vld [vmem:[%s1 + $0x78] sm:$0xf]
        %v343 = vld [vmem:[%s1 + $0x7c] sm:$0xf]
        %v352 = vunpack.c.l.b16 %v304
        %v353 = vunpack.c.h.b16 %v304
        %v354 = vunpack.c.l.b16 %v305
        %v355 = vunpack.c.h.b16 %v305
        %v356 = vunpack.c.l.b16 %v306
        %v357 = vunpack.c.h.b16 %v306
        %v358 = vunpack.c.l.b16 %v307
        %v359 = vunpack.c.h.b16 %v307
        %v360 = vunpack.c.l.b16 %v308
        %v361 = vunpack.c.h.b16 %v308
        %v362 = vunpack.c.l.b16 %v309
        %v363 = vunpack.c.h.b16 %v309
        %v364 = vunpack.c.l.b16 %v310
        %v365 = vunpack.c.h.b16 %v310
        %v366 = vunpack.c.l.b16 %v311
        %v367 = vunpack.c.h.b16 %v311
        %v368 = vpack.c.b16 %v354, %v352
        %v369 = vpack.c.b16 %v355, %v353
        %v370 = vpack.c.b16 %v358, %v356
        %v371 = vpack.c.b16 %v359, %v357
        %v372 = vpack.c.b16 %v362, %v360
        %v373 = vpack.c.b16 %v363, %v361
        %v374 = vpack.c.b16 %v366, %v364
        %v375 = vpack.c.b16 %v367, %v365
        %v416 = vunpack.c.l.b16 %v312
        %v417 = vunpack.c.l.b16 %v313
        %v418 = vunpack.c.l.b16 %v314
        %v419 = vunpack.c.l.b16 %v315
        %v420 = vunpack.c.l.b16 %v316
        %v421 = vunpack.c.l.b16 %v317
        %v422 = vunpack.c.l.b16 %v318
        %v423 = vunpack.c.l.b16 %v319
        %v424 = vunpack.c.l.b16 %v320
        %v425 = vunpack.c.l.b16 %v321
        %v426 = vunpack.c.l.b16 %v322
        %v427 = vunpack.c.l.b16 %v323
        %v428 = vunpack.c.l.b16 %v324
        %v429 = vunpack.c.l.b16 %v325
        %v430 = vunpack.c.l.b16 %v326
        %v431 = vunpack.c.l.b16 %v327
        %v432 = vunpack.c.l.b16 %v328
        %v433 = vunpack.c.l.b16 %v329
        %v434 = vunpack.c.l.b16 %v330
        %v435 = vunpack.c.l.b16 %v331
        %v436 = vunpack.c.l.b16 %v332
        %v437 = vunpack.c.l.b16 %v333
        %v438 = vunpack.c.l.b16 %v334
        %v439 = vunpack.c.l.b16 %v335
        %v440 = vunpack.c.l.b16 %v336
        %v441 = vunpack.c.l.b16 %v337
        %v442 = vunpack.c.l.b16 %v338
        %v443 = vunpack.c.l.b16 %v339
        %v444 = vunpack.c.l.b16 %v340
        %v445 = vunpack.c.l.b16 %v341
        %v446 = vunpack.c.l.b16 %v342
        %v447 = vunpack.c.l.b16 %v343
        %v448 = vpack.c.b16 %v417, %v416
        %v449 = vpack.c.b16 %v419, %v418
        %v450 = vpack.c.b16 %v421, %v420
        %v451 = vpack.c.b16 %v423, %v422
        %v452 = vpack.c.b16 %v425, %v424
        %v453 = vpack.c.b16 %v427, %v426
        %v454 = vpack.c.b16 %v429, %v428
        %v455 = vpack.c.b16 %v431, %v430
        %v456 = vpack.c.b16 %v433, %v432
        %v457 = vpack.c.b16 %v435, %v434
        %v458 = vpack.c.b16 %v437, %v436
        %v459 = vpack.c.b16 %v439, %v438
        %v460 = vpack.c.b16 %v441, %v440
        %v461 = vpack.c.b16 %v443, %v442
        %v462 = vpack.c.b16 %v445, %v444
        %v463 = vpack.c.b16 %v447, %v446
        %480 = vmatpush.bf16.msra.mxu0 %v455
        %481 = vmatpush.bf16.msra.mxu0 %v454
        %482 = vmatpush.bf16.msra.mxu0 %v453
        %483 = vmatpush.bf16.msra.mxu0 %v452
        %484 = vmatpush.bf16.msra.mxu0 %v451
        %485 = vmatpush.bf16.msra.mxu0 %v450
        %486 = vmatpush.bf16.msra.mxu0 %v449
        %487 = vmatpush.bf16.msra.mxu0 %v448
        %488 = vmatmul.bf16.gmra.mxu0 %v368
        %v489 = vpop.f32.mrf.mxu0
        %v490 = vadd.f32 0.0, %v489
        %v491 = vpop.f32.mrf.mxu0
        %v492 = vadd.f32 0.0, %v491
        %493 = vmatmul.bf16.gmra.mxu0 %v370
        %v494 = vpop.f32.mrf.mxu0
        %v495 = vadd.f32 0.0, %v494
        %v496 = vpop.f32.mrf.mxu0
        %v497 = vadd.f32 0.0, %v496
        %498 = vmatmul.bf16.gmra.mxu0 %v372
        %v499 = vpop.f32.mrf.mxu0
        %v500 = vadd.f32 0.0, %v499
        %v501 = vpop.f32.mrf.mxu0
        %v502 = vadd.f32 0.0, %v501
        %503 = vmatmul.bf16.gmra.mxu0 %v374
        %v504 = vpop.f32.mrf.mxu0
        %v505 = vadd.f32 0.0, %v504
        %v506 = vpop.f32.mrf.mxu0
        %v507 = vadd.f32 0.0, %v506
        %508 = vdwg.mxu0
        %509 = vmatpush.bf16.msra.mxu0 %v463
        %510 = vmatpush.bf16.msra.mxu0 %v462
        %511 = vmatpush.bf16.msra.mxu0 %v461
        %512 = vmatpush.bf16.msra.mxu0 %v460
        %513 = vmatpush.bf16.msra.mxu0 %v459
        %514 = vmatpush.bf16.msra.mxu0 %v458
        %515 = vmatpush.bf16.msra.mxu0 %v457
        %516 = vmatpush.bf16.msra.mxu0 %v456
        %517 = vmatmul.bf16.gmra.mxu0 %v369
        %v518 = vpop.f32.mrf.mxu0
        %v519 = vadd.f32 %v490, %v518
        %v520 = vpop.f32.mrf.mxu0
        %v521 = vadd.f32 %v492, %v520
        %522 = vmatmul.bf16.gmra.mxu0 %v371
        %v523 = vpop.f32.mrf.mxu0
        %v524 = vadd.f32 %v495, %v523
        %v525 = vpop.f32.mrf.mxu0
        %v526 = vadd.f32 %v497, %v525
        %527 = vmatmul.bf16.gmra.mxu0 %v373
        %v528 = vpop.f32.mrf.mxu0
        %v529 = vadd.f32 %v500, %v528
        %v530 = vpop.f32.mrf.mxu0
        %v531 = vadd.f32 %v502, %v530
        %532 = vmatmul.bf16.gmra.mxu0 %v375
        %v533 = vpop.f32.mrf.mxu0
        %v534 = vadd.f32 %v505, %v533
        %v535 = vpop.f32.mrf.mxu0
        %v536 = vadd.f32 %v507, %v535
        %537 = vdwg.mxu0
        %v538 = vmax.f32 %v519, %v524
        %v539 = vmax.f32 %v521, %v526
        %v540 = vmax.f32 %v529, %v534
        %v541 = vmax.f32 %v531, %v536
        %v542 = vmax.f32 %v538, %v540
        %v543 = vmax.f32 %v539, %v541
        %v544 = vld [vmem:[%s2] sm:$0x1]
        %v546 = vperm.slane %v544, 0
        %v548 = vadd.f32 %v542, %v546
        %v549 = vadd.f32 %v543, %v546
        %v550 = vmax.f32 %v548, 0.0
        %v551 = vmax.f32 %v549, 0.0
        %v552 = vpack.c.bf16 %v551, %v550
        %v553 = vld [vmem:[%s3] sm:$0xff]
        %v554 = vld [vmem:[%s3 + $0x8] sm:$0xf]
        %v555 = vld [vmem:[%s3 + $0xc] sm:$0xff]
        %v556 = vld [vmem:[%s3 + $0x14] sm:$0xf]
        %v557 = vld [vmem:[%s3 + $0x18] sm:$0x33]
        %v558 = vld [vmem:[%s3 + $0x20] sm:$0x3]
        %v565 = vunpack.c.l.b16 %v553
        %v566 = vunpack.c.h.b16 %v553
        %v567 = vunpack.c.l.b16 %v554
        %v568 = vunpack.c.l.b16 %v555
        %v569 = vunpack.c.h.b16 %v555
        %v570 = vunpack.c.l.b16 %v556
        %v571 = vunpack.c.l.b16 %v557
        %v572 = vunpack.c.h.b16 %v557
        %v573 = vunpack.c.l.b16 %v558
        %v574 = vpack.c.b16 %v568, %v565
        %v575 = vpack.c.b16 %v569, %v566
        %v576 = vpack.c.b16 %v570, %v567
        %v577 = vpack.c.b16 %v571, %v571
        %v578 = vpack.c.b16 %v572, %v572
        %v579 = vpack.c.b16 %v573, %v573
        %vm583 = vcmask 162816
        %v585 = vsel %vm583, %v552, 0
        %vm587 = vcmask 1041408
        %v589 = vsel %vm587, %v577, 0
        %v592 = vsel %vm587, %v578, 0
        %v595 = vsel %vm587, %v579, 0
        %597 = vmatpush.bf16.msra.mxu0 0
        %598 = vmatpush.bf16.msra.mxu0 0
        %599 = vmatpush.bf16.msra.mxu0 0
        %600 = vmatpush.bf16.msra.mxu0 0
        %601 = vmatpush.bf16.msra.mxu0 0
        %602 = vmatpush.bf16.msra.mxu0 0
        %603 = vmatpush.bf16.msra.mxu0 %v589
        %604 = vmatpush.bf16.msra.mxu0 %v574
        %605 = vmatmul.bf16.gmra.mxu0 %v585
        %v606 = vpop.f32.mrf.mxu0
        %v607 = vadd.f32 0.0, %v606
        %v608 = vpop.f32.mrf.mxu0
        %v609 = vadd.f32 0.0, %v608
        %610 = vdwg.mxu0
        %611 = vmatpush.bf16.msra.mxu0 0
        %612 = vmatpush.bf16.msra.mxu0 0
        %613 = vmatpush.bf16.msra.mxu0 0
        %614 = vmatpush.bf16.msra.mxu0 0
        %615 = vmatpush.bf16.msra.mxu0 0
        %616 = vmatpush.bf16.msra.mxu0 0
        %617 = vmatpush.bf16.msra.mxu0 %v592
        %618 = vmatpush.bf16.msra.mxu0 %v575
        %619 = vmatmul.bf16.gmra.mxu0 %v585
        %v620 = vpop.f32.mrf.mxu0
        %v621 = vadd.f32 0.0, %v620
        %v622 = vpop.f32.mrf.mxu0
        %v623 = vadd.f32 0.0, %v622
        %624 = vdwg.mxu0
        %625 = vmatpush.bf16.msra.mxu0 0
        %626 = vmatpush.bf16.msra.mxu0 0
        %627 = vmatpush.bf16.msra.mxu0 0
        %628 = vmatpush.bf16.msra.mxu0 0
        %629 = vmatpush.bf16.msra.mxu0 0
        %630 = vmatpush.bf16.msra.mxu0 0
        %631 = vmatpush.bf16.msra.mxu0 %v595
        %632 = vmatpush.bf16.msra.mxu0 %v576
        %633 = vmatmul.bf16.gmra.mxu0 %v585
        %v634 = vpop.f32.mrf.mxu0
        %v635 = vadd.f32 0.0, %v634
        %v636 = vpop.f32.mrf.mxu0
        %v637 = vadd.f32 0.0, %v636
        %638 = vdwg.mxu0
        %v639 = vlaneseq
        %v640 = vshrl.u32 %v639, 7
        %v641 = vadd.s32 %v640, 8
        %v642 = vlaneseq
        %v643 = vand.u32 %v642, 127
        %v644 = vadd.s32 %v643, 128
        %v645 = vadd.s32 %v643, 256
        %v646 = vmul.u32 %v640, 20
        %v647 = vmul.u32 %v641, 20
        %vm648 = vcmp.ge.s32.totalorder %v643, %v646
        %vm649 = vcmp.ge.s32.totalorder %v644, %v646
        %vm650 = vcmp.ge.s32.totalorder %v645, %v646
        %vm651 = vcmp.ge.s32.totalorder %v643, %v647
        %vm652 = vcmp.ge.s32.totalorder %v644, %v647
        %vm653 = vcmp.ge.s32.totalorder %v645, %v647
        %v654 = vadd.s32 %v640, 1
        %v655 = vadd.s32 %v641, 1
        %v656 = vmul.u32 %v654, 20
        %v657 = vmul.u32 %v655, 20
        %vm658 = vcmp.lt.s32.totalorder %v643, %v656
        %vm659 = vcmp.lt.s32.totalorder %v644, %v656
        %vm660 = vcmp.lt.s32.totalorder %v645, %v656
        %vm661 = vcmp.lt.s32.totalorder %v643, %v657
        %vm662 = vcmp.lt.s32.totalorder %v644, %v657
        %vm663 = vcmp.lt.s32.totalorder %v645, %v657
        %vm664 = vmand %vm648, %vm658
        %vm665 = vmand %vm649, %vm659
        %vm666 = vmand %vm650, %vm660
        %vm667 = vmand %vm651, %vm661
        %vm668 = vmand %vm652, %vm662
        %vm669 = vmand %vm653, %vm663
        %v670 = vsel %vm664, %v607, 0.0
        %v671 = vsel %vm665, %v621, 0.0
        %v672 = vsel %vm666, %v635, 0.0
        %v673 = vsel %vm667, %v609, 0.0
        %v674 = vsel %vm668, %v623, 0.0
        %v675 = vsel %vm669, %v637, 0.0
        %v676 = vpack.c.bf16 %v673, %v670
        %v677 = vpack.c.bf16 %v674, %v671
        %v678 = vpack.c.bf16 %v675, %v672
        %v679 = vld [vmem:[%s4] sm:$0xf]
        %v680 = vld [vmem:[%s4 + $0x4] sm:$0xf]
        %v681 = vld [vmem:[%s4 + $0x8] sm:$0xf]
        %v682 = vld [vmem:[%s4 + $0xc] sm:$0xf]
        %v683 = vld [vmem:[%s4 + $0x10] sm:$0xf]
        %v684 = vld [vmem:[%s4 + $0x14] sm:$0xf]
        %v685 = vld [vmem:[%s4 + $0x18] sm:$0xf]
        %v686 = vld [vmem:[%s4 + $0x1c] sm:$0xf]
        %v687 = vld [vmem:[%s4 + $0x20] sm:$0xf]
        %v688 = vld [vmem:[%s4 + $0x24] sm:$0xf]
        %v689 = vld [vmem:[%s4 + $0x28] sm:$0xf]
        %v690 = vld [vmem:[%s4 + $0x2c] sm:$0xf]
        %v691 = vld [vmem:[%s4 + $0x30] sm:$0xf]
        %v692 = vld [vmem:[%s4 + $0x34] sm:$0xf]
        %v693 = vld [vmem:[%s4 + $0x38] sm:$0xf]
        %v694 = vld [vmem:[%s4 + $0x3c] sm:$0xf]
        %v695 = vld [vmem:[%s4 + $0x40] sm:$0xf]
        %v696 = vld [vmem:[%s4 + $0x44] sm:$0xf]
        %v697 = vld [vmem:[%s4 + $0x48] sm:$0xf]
        %v698 = vld [vmem:[%s4 + $0x4c] sm:$0xf]
        %v699 = vld [vmem:[%s4 + $0x50] sm:$0xf]
        %v700 = vld [vmem:[%s4 + $0x54] sm:$0xf]
        %v701 = vld [vmem:[%s4 + $0x58] sm:$0xf]
        %v702 = vld [vmem:[%s4 + $0x5c] sm:$0xf]
        %v703 = vld [vmem:[%s4 + $0x60] sm:$0xf]
        %v704 = vld [vmem:[%s4 + $0x64] sm:$0xf]
        %v705 = vld [vmem:[%s4 + $0x68] sm:$0xf]
        %v706 = vld [vmem:[%s4 + $0x6c] sm:$0xf]
        %v707 = vld [vmem:[%s4 + $0x70] sm:$0xf]
        %v708 = vld [vmem:[%s4 + $0x74] sm:$0xf]
        %v709 = vld [vmem:[%s4 + $0x78] sm:$0xf]
        %v710 = vld [vmem:[%s4 + $0x7c] sm:$0xf]
        %v711 = vld [vmem:[%s4 + $0x80] sm:$0xf]
        %v712 = vld [vmem:[%s4 + $0x84] sm:$0xf]
        %v713 = vld [vmem:[%s4 + $0x88] sm:$0xf]
        %v714 = vld [vmem:[%s4 + $0x8c] sm:$0xf]
        %v715 = vld [vmem:[%s4 + $0x90] sm:$0xf]
        %v716 = vld [vmem:[%s4 + $0x94] sm:$0xf]
        %v717 = vld [vmem:[%s4 + $0x98] sm:$0xf]
        %v718 = vld [vmem:[%s4 + $0x9c] sm:$0xf]
        %v759 = vunpack.c.l.b16 %v679
        %v760 = vunpack.c.l.b16 %v680
        %v761 = vunpack.c.l.b16 %v681
        %v762 = vunpack.c.l.b16 %v682
        %v763 = vunpack.c.l.b16 %v683
        %v764 = vunpack.c.l.b16 %v684
        %v765 = vunpack.c.l.b16 %v685
        %v766 = vunpack.c.l.b16 %v686
        %v767 = vunpack.c.l.b16 %v687
        %v768 = vunpack.c.l.b16 %v688
        %v769 = vunpack.c.l.b16 %v689
        %v770 = vunpack.c.l.b16 %v690
        %v771 = vunpack.c.l.b16 %v691
        %v772 = vunpack.c.l.b16 %v692
        %v773 = vunpack.c.l.b16 %v693
        %v774 = vunpack.c.l.b16 %v694
        %v775 = vunpack.c.l.b16 %v695
        %v776 = vunpack.c.l.b16 %v696
        %v777 = vunpack.c.l.b16 %v697
        %v778 = vunpack.c.l.b16 %v698
        %v779 = vunpack.c.l.b16 %v699
        %v780 = vunpack.c.l.b16 %v700
        %v781 = vunpack.c.l.b16 %v701
        %v782 = vunpack.c.l.b16 %v702
        %v783 = vunpack.c.l.b16 %v703
        %v784 = vunpack.c.l.b16 %v704
        %v785 = vunpack.c.l.b16 %v705
        %v786 = vunpack.c.l.b16 %v706
        %v787 = vunpack.c.l.b16 %v707
        %v788 = vunpack.c.l.b16 %v708
        %v789 = vunpack.c.l.b16 %v709
        %v790 = vunpack.c.l.b16 %v710
        %v791 = vunpack.c.l.b16 %v711
        %v792 = vunpack.c.l.b16 %v712
        %v793 = vunpack.c.l.b16 %v713
        %v794 = vunpack.c.l.b16 %v714
        %v795 = vunpack.c.l.b16 %v715
        %v796 = vunpack.c.l.b16 %v716
        %v797 = vunpack.c.l.b16 %v717
        %v798 = vunpack.c.l.b16 %v718
        %v799 = vpack.c.b16 %v760, %v759
        %v800 = vpack.c.b16 %v762, %v761
        %v801 = vpack.c.b16 %v764, %v763
        %v802 = vpack.c.b16 %v766, %v765
        %v803 = vpack.c.b16 %v768, %v767
        %v804 = vpack.c.b16 %v770, %v769
        %v805 = vpack.c.b16 %v772, %v771
        %v806 = vpack.c.b16 %v774, %v773
        %v807 = vpack.c.b16 %v776, %v775
        %v808 = vpack.c.b16 %v778, %v777
        %v809 = vpack.c.b16 %v780, %v779
        %v810 = vpack.c.b16 %v782, %v781
        %v811 = vpack.c.b16 %v784, %v783
        %v812 = vpack.c.b16 %v786, %v785
        %v813 = vpack.c.b16 %v788, %v787
        %v814 = vpack.c.b16 %v790, %v789
        %v815 = vpack.c.b16 %v792, %v791
        %v816 = vpack.c.b16 %v794, %v793
        %v817 = vpack.c.b16 %v796, %v795
        %v818 = vpack.c.b16 %v798, %v797
        %vm839 = vcmask 523264
        %v841 = vsel %vm839, %v678, 0
        %843 = vmatpush.bf16.msra.mxu0 %v806
        %844 = vmatpush.bf16.msra.mxu0 %v805
        %845 = vmatpush.bf16.msra.mxu0 %v804
        %846 = vmatpush.bf16.msra.mxu0 %v803
        %847 = vmatpush.bf16.msra.mxu0 %v802
        %848 = vmatpush.bf16.msra.mxu0 %v801
        %849 = vmatpush.bf16.msra.mxu0 %v800
        %850 = vmatpush.bf16.msra.mxu0 %v799
        %851 = vmatmul.bf16.gmra.mxu0 %v676
        %v852 = vpop.f32.mrf.mxu0
        %v853 = vadd.f32 0.0, %v852
        %v854 = vpop.f32.mrf.mxu0
        %v855 = vadd.f32 0.0, %v854
        %856 = vdwg.mxu0
        %857 = vmatpush.bf16.msra.mxu0 %v814
        %858 = vmatpush.bf16.msra.mxu0 %v813
        %859 = vmatpush.bf16.msra.mxu0 %v812
        %860 = vmatpush.bf16.msra.mxu0 %v811
        %861 = vmatpush.bf16.msra.mxu0 %v810
        %862 = vmatpush.bf16.msra.mxu0 %v809
        %863 = vmatpush.bf16.msra.mxu0 %v808
        %864 = vmatpush.bf16.msra.mxu0 %v807
        %865 = vmatmul.bf16.gmra.mxu0 %v677
        %v866 = vpop.f32.mrf.mxu0
        %v867 = vadd.f32 %v853, %v866
        %v868 = vpop.f32.mrf.mxu0
        %v869 = vadd.f32 %v855, %v868
        %870 = vdwg.mxu0
        %871 = vmatpush.bf16.msra.mxu0 0
        %872 = vmatpush.bf16.msra.mxu0 0
        %873 = vmatpush.bf16.msra.mxu0 0
        %874 = vmatpush.bf16.msra.mxu0 0
        %875 = vmatpush.bf16.msra.mxu0 %v818
        %876 = vmatpush.bf16.msra.mxu0 %v817
        %877 = vmatpush.bf16.msra.mxu0 %v816
        %878 = vmatpush.bf16.msra.mxu0 %v815
        %879 = vmatmul.bf16.gmra.mxu0 %v841
        %v880 = vpop.f32.mrf.mxu0
        %v881 = vadd.f32 %v867, %v880
        %v882 = vpop.f32.mrf.mxu0
        %v883 = vadd.f32 %v869, %v882
        %884 = vdwg.mxu0
        %v885 = vadd.f32 %v881, %v883
        %v886 = vrot.slane %v885, 4
        %v887 = vadd.f32 %v885, %v886
        %v888 = vrot.slane %v887, 2
        %v889 = vadd.f32 %v887, %v888
        %v890 = vrot.slane %v889, 1
        %v891 = vadd.f32 %v889, %v890
        %v892 = vld [vmem:[%s5] sm:$0x1]
        %v893 = vadd.f32 %v891, %v892
        %v894 = vmax.f32 %v893, 0.0
        %v895 = vpack.c.bf16 %v894, %v894
        %v896 = vld [vmem:[%s6] sm:$0xf]
        %v897 = vld [vmem:[%s6 + $0x4] sm:$0xf]
        %v898 = vld [vmem:[%s6 + $0x8] sm:$0xf]
        %v899 = vld [vmem:[%s6 + $0xc] sm:$0xf]
        %v900 = vld [vmem:[%s6 + $0x10] sm:$0xf]
        %v901 = vld [vmem:[%s6 + $0x14] sm:$0xf]
        %v902 = vld [vmem:[%s6 + $0x18] sm:$0xf]
        %v903 = vld [vmem:[%s6 + $0x1c] sm:$0xf]
        %v904 = vld [vmem:[%s6 + $0x20] sm:$0xf]
        %v905 = vld [vmem:[%s6 + $0x24] sm:$0xf]
        %v906 = vld [vmem:[%s6 + $0x28] sm:$0xf]
        %v907 = vld [vmem:[%s6 + $0x2c] sm:$0xf]
        %v908 = vld [vmem:[%s6 + $0x30] sm:$0xf]
        %v909 = vld [vmem:[%s6 + $0x34] sm:$0xf]
        %v910 = vld [vmem:[%s6 + $0x38] sm:$0xf]
        %v911 = vld [vmem:[%s6 + $0x3c] sm:$0xf]
        %v912 = vld [vmem:[%s7] sm:$0x1]
        %v929 = vunpack.c.l.b16 %v896
        %v930 = vunpack.c.l.b16 %v897
        %v931 = vunpack.c.l.b16 %v898
        %v932 = vunpack.c.l.b16 %v899
        %v933 = vunpack.c.l.b16 %v900
        %v934 = vunpack.c.l.b16 %v901
        %v935 = vunpack.c.l.b16 %v902
        %v936 = vunpack.c.l.b16 %v903
        %v937 = vunpack.c.l.b16 %v904
        %v938 = vunpack.c.l.b16 %v905
        %v939 = vunpack.c.l.b16 %v906
        %v940 = vunpack.c.l.b16 %v907
        %v941 = vunpack.c.l.b16 %v908
        %v942 = vunpack.c.l.b16 %v909
        %v943 = vunpack.c.l.b16 %v910
        %v944 = vunpack.c.l.b16 %v911
        %v945 = vpack.c.b16 %v930, %v929
        %v946 = vpack.c.b16 %v932, %v931
        %v947 = vpack.c.b16 %v934, %v933
        %v948 = vpack.c.b16 %v936, %v935
        %v949 = vpack.c.b16 %v938, %v937
        %v950 = vpack.c.b16 %v940, %v939
        %v951 = vpack.c.b16 %v942, %v941
        %v952 = vpack.c.b16 %v944, %v943
        %961 = vmatpush.bf16.msra.mxu0 %v952
        %962 = vmatpush.bf16.msra.mxu0 %v951
        %963 = vmatpush.bf16.msra.mxu0 %v950
        %964 = vmatpush.bf16.msra.mxu0 %v949
        %965 = vmatpush.bf16.msra.mxu0 %v948
        %966 = vmatpush.bf16.msra.mxu0 %v947
        %967 = vmatpush.bf16.msra.mxu0 %v946
        %968 = vmatpush.bf16.msra.mxu0 %v945
        %969 = vmatmul.bf16.gmra.mxu0 %v895
        %v970 = vpop.f32.mrf.mxu0
        %v971 = vadd.f32 %v912, %v970
        %v972 = vpop.f32.mrf.mxu0
        %973 = vdwg.mxu0
        %vm974 = vcmask 73728
        %v975 = vsel %vm974, %v971, -inf
        %976 = vmax.xlane.f32.xlu0 %v975
        %v977 = vpop.xlane.xlu0 %976
        %v978 = vsub.f32 %v971, %v977
        %v979 = vmul.f32 %v978, 1.442695
        %v980 = vpow.pop %v979
        %v981 = vsel %vm974, %v980, 0.0
        %982 = vadd.xlane.f32.xlu0 %v981
        %v983 = vpop.xlane.xlu0 %982
        %v984 = vlog2.pop %v983
        %v985 = vmul.f32 %v984, 0.6931472
        %v986 = vadd.f32 %v985, %v977
        %v987 = vsub.f32 %v971, %v986
        %988 = vst.msk [vmem:[%s297] sm:$0x1] %vm974, %v987
        %s989 = sand.u32 %s203, 1
        %s990 = scalar_lea.sflag [#allocation3], %s989
        %s991 = sand.u32 %s203, 1
        %s992 = scalar_lea.vmem [#allocation2], %s991
        // Predicated region
        $region53: #{net_forward.3} parent=51 // pred_check
          %p993 = pneg %p213
        $region54: #{net_forward.3} parent=51 // pred_check_branch
          %995 = sbr.rel (%p993) target = $region56
        $region55: #{net_forward.3} parent=51 // pred_region
          %997 = vsyncadd %s990, 0
          %s998 = scalar_lea.hbm %s8, %s22
          %s1000 = sshll.u32 %s992, 4
          %s1001 = int_to_ptr.vmem [resolvable:$true] %s1000
          %s1002 = sshll.u32 %s998, 4
          %s1003 = int_to_ptr.hbm [resolvable:$true] %s1002
          %1005 = dma.vmem_to_hbm [thread:$0]  %s1001, 16, %s1003, %s990
        $region56: #{net_forward.3} parent=51 // pred_fallthru
          _
      $region52: #{net_forward.3} parent=5 // pred_fallthru
        _
      %p1006 = scmp.le.s32.totalorder 2, %s17
      // Predicated region
      $region57: #{net_forward.3} parent=5 // pred_check
        %p1007 = pneg %p1006
      $region58: #{net_forward.3} parent=5 // pred_check_branch
        %1009 = sbr.rel (%p1007) target = $region60
      $region59: #{net_forward.3} parent=5 // pred_region
        %s1010 = ssub.s32 %s17, 2
        // Predicated region
        $region61: #{net_forward.3} parent=59 // pred_check
          %p1011 = pneg %p219
        $region62: #{net_forward.3} parent=59 // pred_check_branch
          %1013 = sbr.rel (%p1011) target = $region64
        $region63: #{net_forward.3} parent=59 // pred_region
          %s1014 = sand.u32 %s204, 1
          %s1015 = scalar_lea.sflag [#allocation3], %s1014
          %s1016 = sand.u32 %s204, 1
          %s1017 = scalar_lea.vmem [#allocation2], %s1016
          %1019 = dma.done %s1015, 16
        $region64: #{net_forward.3} parent=59 // pred_fallthru
          _
      $region60: #{net_forward.3} parent=5 // pred_fallthru
        _
    $region6: #{net_forward.3} parent=1 // loop_footer
      %s21 = sadd.s32 1, %s17
    $region7: #{net_forward.3} parent=1 // loop_footer_branch
      %16 = sbr.rel target = $region3
    $region8: #{net_forward.3} parent=1 // loop_exit
      _
    %1020 = vsyncpa [#allocation3], 1
    %s1021 = scalar_lea.sflag [#allocation3], 1
    %1022 = vsyncpa %s1021, 1

</llo_original>
